<compile_context>
chip_gen: v5e
topology: v5e:2x2
jax: 0.10.0
libtpu: 0.0.40
codegen_flags: <defaults>
</compile_context>

<pallas_src>
import jax
import jax.numpy as jnp
from jax.experimental import pallas as pl
from jax.experimental.pallas import tpu as pltpu


LANE = 128


def _round_up(n, m):
    return ((n + m - 1) // m) * m


def _pad_to(a, shape):
    pads = [(0, s - d) for d, s in zip(a.shape, shape)]
    if all(p == (0, 0) for p in pads):
        return a
    return jnp.pad(a, pads)


# ----------------------------- Pallas kernel ------------------------------- #

def _make_kernel(*, epsilon, K, delta_t, ring):
    """Builds the fused per-graph kernel body (one grid step == one graph)."""

    def kernel(*refs):
        if ring:
            (x_ref, emb_w_ref, emb_b_ref, tag_w_ref, tag_b_ref,
             ro_w_ref, ro_b_ref, y_ref, hm_ref) = refs
            a = None
        else:
            (x_ref, a_ref, emb_w_ref, emb_b_ref, tag_w_ref, tag_b_ref,
             ro_w_ref, ro_b_ref, y_ref, hm_ref) = refs
            a = a_ref[...]

        N = x_ref.shape[0]
        Fp = emb_w_ref.shape[1]

        # Load weights once; they live in vregs/VMEM for the whole integration.
        w_k = [tag_w_ref[k] for k in range(K + 1)]
        # Hoisted bias broadcast (JAX does not CSE broadcast_in_dim in loops).
        tag_bias = jnp.broadcast_to(tag_b_ref[...], (N, Fp))

        # emb: Linear(input_dim -> hidden_dim), all lanes padded to 128.
        h = (jnp.dot(x_ref[...], emb_w_ref[...],
                     preferred_element_type=jnp.float32) + emb_b_ref[...])

        def propagate(v):
            if ring:
                # Ring graph, gcn_norm without self loops:
                #   (A_norm v)[i] = 0.5 * (v[i-1] + v[i+1])
                # Sublane rotates use the XLU slot -> no MXU op on the chain.
                return 0.5 * (pltpu.roll(v, 1, axis=0)
                              + pltpu.roll(v, N - 1, axis=0))
            return jnp.dot(a, v, preferred_element_type=jnp.float32)

        def tagconv(hh):
            # Per-k accumulation: sum_k (A^k hh) W_k + b.  No lane-axis concat
            # (a 32/64-lane concat would need XLU lane shifts); on v7x the K+1
            # MXU pushes accumulate in place in the MRB.
            acc = jnp.dot(hh, w_k[0], preferred_element_type=jnp.float32) + tag_bias
            xk = hh
            for k in range(1, K + 1):
                xk = propagate(xk)
                acc = acc + jnp.dot(xk, w_k[k], preferred_element_type=jnp.float32)
            return acc

        # Explicit-midpoint integration.  delta_t is a small static int so a
        # Python unroll is fine here.
        # TODO(synk): switch to lax.fori_loop(..., unroll=small) for large
        # delta_t to keep vreg live ranges bounded.
        h_mid = h
        for _ in range(delta_t):
            h_mid = h + (0.5 * epsilon) * jnp.tanh(tagconv(h))
            h = h + epsilon * jnp.tanh(tagconv(h_mid))

        # Lane-dense (width 128) stores; wrapper slices back to real widths.
        hm_ref[...] = h_mid
        y_ref[...] = (jnp.dot(h_mid, ro_w_ref[...],
                              preferred_element_type=jnp.float32) + ro_b_ref[...])

    return kernel


# ------------------------------ Model wrapper ------------------------------ #

def graph_midpoint_forward(params, x, a_norm=None, *, delta_t, epsilon, K,
                           ring_graph=False):
    """Fused forward.

    x:      (B, N, Fin) or (N, Fin)
    a_norm: (B, N, N)   or (N, N)   dense normalized adjacency
            (ignored when ring_graph=True).
    Returns (y, h_middle) with real (unpadded) feature widths.
    """
    squeeze = False
    if x.ndim == 2:
        x = x[None]
        if a_norm is not None and a_norm.ndim == 2:
            a_norm = a_norm[None]
        squeeze = True

    B, N, Fin = x.shape
    F = params["emb_w"].shape[1]
    Fout = params["ro_w"].shape[1]
    assert N % 8 == 0, "node count must be a multiple of 8 (sublane tile)"

    # Lane-dense working layout: pad every feature axis to a multiple of 128.
    # Zero padding is exact (padded weight rows/cols and biases are zero).
    Fin_p = _round_up(Fin, LANE)
    Fp = _round_up(F, LANE)
    Fout_p = _round_up(Fout, LANE)

    x_p = _pad_to(x, (B, N, Fin_p))
    emb_w = _pad_to(params["emb_w"], (Fin_p, Fp))
    emb_b = _pad_to(params["emb_b"].reshape(1, -1), (1, Fp))
    tag_w = _pad_to(params["tag_w"], (K + 1, Fp, Fp))
    tag_b = _pad_to(params["tag_b"].reshape(1, -1), (1, Fp))
    ro_w = _pad_to(params["ro_w"], (Fp, Fout_p))
    ro_b = _pad_to(params["ro_b"].reshape(1, -1), (1, Fout_p))

    kern = _make_kernel(epsilon=epsilon, K=K, delta_t=delta_t, ring=ring_graph)

    def node_spec(width):
        return pl.BlockSpec((pl.Squeezed(), N, width), lambda b: (b, 0, 0))

    def weight_spec(s0, s1):
        return pl.BlockSpec((s0, s1), lambda b: (0, 0))

    in_specs = [node_spec(Fin_p)]
    args = [x_p]
    if not ring_graph:
        in_specs.append(pl.BlockSpec((pl.Squeezed(), N, N), lambda b: (b, 0, 0)))
        args.append(a_norm.astype(jnp.float32))
    in_specs += [
        weight_spec(Fin_p, Fp),                              # emb_w
        weight_spec(1, Fp),                                  # emb_b
        pl.BlockSpec((K + 1, Fp, Fp), lambda b: (0, 0, 0)),  # tag_w
        weight_spec(1, Fp),                                  # tag_b
        weight_spec(Fp, Fout_p),                             # ro_w
        weight_spec(1, Fout_p),                              # ro_b
    ]
    args += [emb_w, emb_b, tag_w, tag_b, ro_w, ro_b]

    # Advisory cost estimate for XLA scheduling.
    prop_flops = 0 if ring_graph else 2 * N * N * Fp
    tag_flops = K * prop_flops + (K + 1) * 2 * N * Fp * Fp
    flops = B * (2 * N * Fin_p * Fp + 2 * delta_t * tag_flops + 2 * N * Fp * Fout_p)
    transcendentals = B * 2 * delta_t * N * Fp
    bytes_accessed = 4 * (
        B * (N * Fin_p + (0 if ring_graph else N * N) + N * Fout_p + N * Fp)
        + Fin_p * Fp + Fp + (K + 1) * Fp * Fp + Fp + Fp * Fout_p + Fout_p
    )
    cost = pl.CostEstimate(flops=flops, transcendentals=transcendentals,
                           bytes_accessed=bytes_accessed)

    # TODO(synk): for large N, the dense (N,N) adjacency hits v7x's 64 MiB
    # physical VMEM ~1.4x earlier in N than v5e/v6e; switch to a row-tiled /
    # scalar-prefetched SpMM path (and re-derive vmem_limit_bytes) before that.
    y_p, hm_p = pl.pallas_call(
        kern,
        out_shape=(jax.ShapeDtypeStruct((B, N, Fout_p), jnp.float32),
                   jax.ShapeDtypeStruct((B, N, Fp), jnp.float32)),
        grid=(B,),
        in_specs=in_specs,
        out_specs=(node_spec(Fout_p), node_spec(Fp)),
        compiler_params=pltpu.CompilerParams(
            dimension_semantics=("parallel",),
            vmem_limit_bytes=32 * 1024 * 1024,
        ),
        cost_estimate=cost,
    )(*args)

    y = y_p[..., :Fout]
    h_mid = hm_p[..., :F]
    if squeeze:
        y, h_mid = y[0], h_mid[0]
    return y, h_mid


# ------------------------------ Plain-JAX reference ------------------------ #

def reference_forward(params, x, a_norm, *, delta_t, epsilon, K):
    def tagconv(h):
        acc = h @ params["tag_w"][0]
        xk = h
        for k in range(1, K + 1):
            xk = a_norm @ xk
            acc = acc + xk @ params["tag_w"][k]
        return acc + params["tag_b"]

    h = x @ params["emb_w"] + params["emb_b"]
    h_middle = h
    for _ in range(delta_t):
        conv = tagconv(h)
        h_middle = h + 0.5 * epsilon * jnp.tanh(conv)
        conv_mid = tagconv(h_middle)
        h = h + epsilon * jnp.tanh(conv_mid)
    y = h_middle @ params["ro_w"] + params["ro_b"]
    return y, h_middle


def build_normalized_adjacency(N):
    # Deterministic ring graph (i <-> i+1 mod N), gcn_norm without self-loops:
    # A_norm = D^{-1/2} A D^{-1/2}
    idx = jnp.arange(N)
    A = jnp.zeros((N, N), jnp.float32)
    A = A.at[idx, (idx + 1) % N].set(1.0)
    A = A.at[(idx + 1) % N, idx].set(1.0)
    deg = A.sum(axis=1)
    d_inv_sqrt = jnp.where(deg > 0, 1.0 / jnp.sqrt(deg), 0.0)
    return d_inv_sqrt[:, None] * A * d_inv_sqrt[None, :]


# ---------------------------------- main ----------------------------------- #

if __name__ == "__main__":
    # Small, deterministic problem.  B graphs share weights (one pallas_call).
    B = 4           # batch of graphs (leading "parallel" grid axis)
    N = 16          # nodes per graph
    input_dim = 8
    hidden_dim = 32
    output_dim = 8
    K = 2
    epsilon = 0.1
    delta_t = 3

    key = jax.random.PRNGKey(0)
    keys = jax.random.split(key, 8)

    params = {
        "emb_w": 0.1 * jax.random.normal(keys[0], (input_dim, hidden_dim), jnp.float32),
        "emb_b": 0.1 * jax.random.normal(keys[1], (hidden_dim,), jnp.float32),
        # TAGConv: K+1 weight matrices (no per-lin bias) + a single bias vector.
        "tag_w": 0.1 * jax.random.normal(keys[2], (K + 1, hidden_dim, hidden_dim), jnp.float32),
        "tag_b": 0.1 * jax.random.normal(keys[3], (hidden_dim,), jnp.float32),
        "ro_w": 0.1 * jax.random.normal(keys[4], (hidden_dim, output_dim), jnp.float32),
        "ro_b": 0.1 * jax.random.normal(keys[5], (output_dim,), jnp.float32),
    }

    x = jax.random.normal(keys[6], (B, N, input_dim), jnp.float32)
    a_ring = build_normalized_adjacency(N)
    a_norm = jnp.stack([a_ring] * B)

    # --- general dense-adjacency path (matches the module for any graph) ----
    y, h_mid = graph_midpoint_forward(
        params, x, a_norm, delta_t=delta_t, epsilon=epsilon, K=K, ring_graph=False
    )
    y = jax.block_until_ready(y)
    h_mid = jax.block_until_ready(h_mid)

    # --- ring-structured fast path (pltpu.roll propagation) -----------------
    y_r, h_mid_r = graph_midpoint_forward(
        params, x, None, delta_t=delta_t, epsilon=epsilon, K=K, ring_graph=True
    )
    y_r = jax.block_until_ready(y_r)
    h_mid_r = jax.block_until_ready(h_mid_r)

    # Correctness check against the plain-JAX reference, per graph.
    y_ref, hm_ref = [], []
    for b in range(B):
        yb, hb = reference_forward(
            params, x[b], a_ring, delta_t=delta_t, epsilon=epsilon, K=K
        )
        y_ref.append(yb)
        hm_ref.append(hb)
    y_ref = jnp.stack(y_ref)
    hm_ref = jnp.stack(hm_ref)

    assert y.shape == (B, N, output_dim) and h_mid.shape == (B, N, hidden_dim)
    assert jnp.allclose(y, y_ref, atol=5e-5, rtol=5e-5)
    assert jnp.allclose(h_mid, hm_ref, atol=5e-5, rtol=5e-5)
    assert jnp.allclose(y_r, y_ref, atol=5e-5, rtol=5e-5)
    assert jnp.allclose(h_mid_r, hm_ref, atol=5e-5, rtol=5e-5)

    print("KERNEL_OK")
</pallas_src>

<mosaic_0001>
module attributes {stable_mosaic.version = 11 : i64} {
  func.func @kernel(%arg0: i32, %arg1: memref<1x16x128xf32, #tpu.memory_space<vmem>>, %arg2: memref<1x16x16xf32, #tpu.memory_space<vmem>>, %arg3: memref<128x128xf32, #tpu.memory_space<vmem>>, %arg4: memref<1x128xf32, #tpu.memory_space<vmem>>, %arg5: memref<3x128x128xf32, #tpu.memory_space<vmem>>, %arg6: memref<1x128xf32, #tpu.memory_space<vmem>>, %arg7: memref<128x128xf32, #tpu.memory_space<vmem>>, %arg8: memref<1x128xf32, #tpu.memory_space<vmem>>, %arg9: memref<1x16x128xf32, #tpu.memory_space<vmem>>, %arg10: memref<1x16x128xf32, #tpu.memory_space<vmem>>) attributes {dimension_semantics = [#tpu.dimension_semantics<parallel>], iteration_bounds = array<i64: 4>, scalar_prefetch = 0 : i64, scratch_operands = 0 : i64, tpu.core_type = #tpu.core_type<tc>, window_params = [{transform_indices = @transform_0, window_bounds = array<i64: 1, 16, 128>}, {transform_indices = @transform_1, window_bounds = array<i64: 1, 16, 16>}, {pipeline_mode = #tpu.pipeline_mode<synchronous>, transform_indices = @transform_2, window_bounds = array<i64: 128, 128>}, {pipeline_mode = #tpu.pipeline_mode<synchronous>, transform_indices = @transform_3, window_bounds = array<i64: 1, 128>}, {pipeline_mode = #tpu.pipeline_mode<synchronous>, transform_indices = @transform_4, window_bounds = array<i64: 3, 128, 128>}, {pipeline_mode = #tpu.pipeline_mode<synchronous>, transform_indices = @transform_5, window_bounds = array<i64: 1, 128>}, {pipeline_mode = #tpu.pipeline_mode<synchronous>, transform_indices = @transform_6, window_bounds = array<i64: 128, 128>}, {pipeline_mode = #tpu.pipeline_mode<synchronous>, transform_indices = @transform_7, window_bounds = array<i64: 1, 128>}, {transform_indices = @transform_8, window_bounds = array<i64: 1, 16, 128>}, {transform_indices = @transform_9, window_bounds = array<i64: 1, 16, 128>}]} {
    %c0 = arith.constant 0 : index
    %c0_0 = arith.constant 0 : index
    %c0_1 = arith.constant 0 : index
    %0 = vector.load %arg2[%c0, %c0_0, %c0_1] : memref<1x16x16xf32, #tpu.memory_space<vmem>>, vector<1x16x16xf32>
    %1 = vector.shape_cast %0 : vector<1x16x16xf32> to vector<16x16xf32>
    %c0_2 = arith.constant 0 : index
    %c0_3 = arith.constant 0 : index
    %c0_4 = arith.constant 0 : index
    %2 = vector.load %arg5[%c0_2, %c0_3, %c0_4] : memref<3x128x128xf32, #tpu.memory_space<vmem>>, vector<1x128x128xf32>
    %3 = vector.shape_cast %2 : vector<1x128x128xf32> to vector<128x128xf32>
    %c1 = arith.constant 1 : index
    %c0_5 = arith.constant 0 : index
    %c0_6 = arith.constant 0 : index
    %4 = vector.load %arg5[%c1, %c0_5, %c0_6] : memref<3x128x128xf32, #tpu.memory_space<vmem>>, vector<1x128x128xf32>
    %5 = vector.shape_cast %4 : vector<1x128x128xf32> to vector<128x128xf32>
    %c2 = arith.constant 2 : index
    %c0_7 = arith.constant 0 : index
    %c0_8 = arith.constant 0 : index
    %6 = vector.load %arg5[%c2, %c0_7, %c0_8] : memref<3x128x128xf32, #tpu.memory_space<vmem>>, vector<1x128x128xf32>
    %7 = vector.shape_cast %6 : vector<1x128x128xf32> to vector<128x128xf32>
    %c0_9 = arith.constant 0 : index
    %c0_10 = arith.constant 0 : index
    %8 = vector.load %arg6[%c0_9, %c0_10] : memref<1x128xf32, #tpu.memory_space<vmem>>, vector<1x128xf32>
    %9 = vector.shape_cast %8 : vector<1x128xf32> to vector<1x128xf32>
    %10 = vector.broadcast %9 : vector<1x128xf32> to vector<16x128xf32>
    %c0_11 = arith.constant 0 : index
    %c0_12 = arith.constant 0 : index
    %c0_13 = arith.constant 0 : index
    %11 = vector.load %arg1[%c0_11, %c0_12, %c0_13] : memref<1x16x128xf32, #tpu.memory_space<vmem>>, vector<1x16x128xf32>
    %12 = vector.shape_cast %11 : vector<1x16x128xf32> to vector<16x128xf32>
    %c0_14 = arith.constant 0 : index
    %c0_15 = arith.constant 0 : index
    %13 = vector.load %arg3[%c0_14, %c0_15] : memref<128x128xf32, #tpu.memory_space<vmem>>, vector<128x128xf32>
    %cst = arith.constant dense<0.000000e+00> : vector<16x128xf32>
    %14 = tpu.matmul %12, %13, %cst {dimension_numbers = #tpu.dot_dimension_numbers<[1], [0], [0], [1], [0, 0, 1, 1], [], []>} : vector<16x128xf32>, vector<128x128xf32>, vector<16x128xf32> -> vector<16x128xf32>
    %c0_16 = arith.constant 0 : index
    %c0_17 = arith.constant 0 : index
    %15 = vector.load %arg4[%c0_16, %c0_17] : memref<1x128xf32, #tpu.memory_space<vmem>>, vector<1x128xf32>
    %16 = vector.broadcast %15 : vector<1x128xf32> to vector<16x128xf32>
    %17 = arith.addf %14, %16 : vector<16x128xf32>
    %cst_18 = arith.constant dense<0.000000e+00> : vector<16x128xf32>
    %18 = tpu.matmul %17, %3, %cst_18 {dimension_numbers = #tpu.dot_dimension_numbers<[1], [0], [0], [1], [0, 0, 1, 1], [], []>} : vector<16x128xf32>, vector<128x128xf32>, vector<16x128xf32> -> vector<16x128xf32>
    %19 = arith.addf %18, %10 : vector<16x128xf32>
    %cst_19 = arith.constant dense<0.000000e+00> : vector<16x128xf32>
    %20 = tpu.matmul %1, %17, %cst_19 {dimension_numbers = #tpu.dot_dimension_numbers<[1], [0], [0], [1], [0, 0, 1, 1], [], []>} : vector<16x16xf32>, vector<16x128xf32>, vector<16x128xf32> -> vector<16x128xf32>
    %cst_20 = arith.constant dense<0.000000e+00> : vector<16x128xf32>
    %21 = tpu.matmul %20, %5, %cst_20 {dimension_numbers = #tpu.dot_dimension_numbers<[1], [0], [0], [1], [0, 0, 1, 1], [], []>} : vector<16x128xf32>, vector<128x128xf32>, vector<16x128xf32> -> vector<16x128xf32>
    %22 = arith.addf %19, %21 : vector<16x128xf32>
    %cst_21 = arith.constant dense<0.000000e+00> : vector<16x128xf32>
    %23 = tpu.matmul %1, %20, %cst_21 {dimension_numbers = #tpu.dot_dimension_numbers<[1], [0], [0], [1], [0, 0, 1, 1], [], []>} : vector<16x16xf32>, vector<16x128xf32>, vector<16x128xf32> -> vector<16x128xf32>
    %cst_22 = arith.constant dense<0.000000e+00> : vector<16x128xf32>
    %24 = tpu.matmul %23, %7, %cst_22 {dimension_numbers = #tpu.dot_dimension_numbers<[1], [0], [0], [1], [0, 0, 1, 1], [], []>} : vector<16x128xf32>, vector<128x128xf32>, vector<16x128xf32> -> vector<16x128xf32>
    %25 = arith.addf %22, %24 : vector<16x128xf32>
    %26 = math.tanh %25 : vector<16x128xf32>
    %cst_23 = arith.constant 5.000000e-02 : f32
    %27 = vector.broadcast %cst_23 : f32 to vector<16x128xf32>
    %28 = arith.mulf %27, %26 : vector<16x128xf32>
    %29 = arith.addf %17, %28 : vector<16x128xf32>
    %cst_24 = arith.constant dense<0.000000e+00> : vector<16x128xf32>
    %30 = tpu.matmul %29, %3, %cst_24 {dimension_numbers = #tpu.dot_dimension_numbers<[1], [0], [0], [1], [0, 0, 1, 1], [], []>} : vector<16x128xf32>, vector<128x128xf32>, vector<16x128xf32> -> vector<16x128xf32>
    %31 = arith.addf %30, %10 : vector<16x128xf32>
    %cst_25 = arith.constant dense<0.000000e+00> : vector<16x128xf32>
    %32 = tpu.matmul %1, %29, %cst_25 {dimension_numbers = #tpu.dot_dimension_numbers<[1], [0], [0], [1], [0, 0, 1, 1], [], []>} : vector<16x16xf32>, vector<16x128xf32>, vector<16x128xf32> -> vector<16x128xf32>
    %cst_26 = arith.constant dense<0.000000e+00> : vector<16x128xf32>
    %33 = tpu.matmul %32, %5, %cst_26 {dimension_numbers = #tpu.dot_dimension_numbers<[1], [0], [0], [1], [0, 0, 1, 1], [], []>} : vector<16x128xf32>, vector<128x128xf32>, vector<16x128xf32> -> vector<16x128xf32>
    %34 = arith.addf %31, %33 : vector<16x128xf32>
    %cst_27 = arith.constant dense<0.000000e+00> : vector<16x128xf32>
    %35 = tpu.matmul %1, %32, %cst_27 {dimension_numbers = #tpu.dot_dimension_numbers<[1], [0], [0], [1], [0, 0, 1, 1], [], []>} : vector<16x16xf32>, vector<16x128xf32>, vector<16x128xf32> -> vector<16x128xf32>
    %cst_28 = arith.constant dense<0.000000e+00> : vector<16x128xf32>
    %36 = tpu.matmul %35, %7, %cst_28 {dimension_numbers = #tpu.dot_dimension_numbers<[1], [0], [0], [1], [0, 0, 1, 1], [], []>} : vector<16x128xf32>, vector<128x128xf32>, vector<16x128xf32> -> vector<16x128xf32>
    %37 = arith.addf %34, %36 : vector<16x128xf32>
    %38 = math.tanh %37 : vector<16x128xf32>
    %cst_29 = arith.constant 1.000000e-01 : f32
    %39 = vector.broadcast %cst_29 : f32 to vector<16x128xf32>
    %40 = arith.mulf %39, %38 : vector<16x128xf32>
    %41 = arith.addf %17, %40 : vector<16x128xf32>
    %cst_30 = arith.constant dense<0.000000e+00> : vector<16x128xf32>
    %42 = tpu.matmul %41, %3, %cst_30 {dimension_numbers = #tpu.dot_dimension_numbers<[1], [0], [0], [1], [0, 0, 1, 1], [], []>} : vector<16x128xf32>, vector<128x128xf32>, vector<16x128xf32> -> vector<16x128xf32>
    %43 = arith.addf %42, %10 : vector<16x128xf32>
    %cst_31 = arith.constant dense<0.000000e+00> : vector<16x128xf32>
    %44 = tpu.matmul %1, %41, %cst_31 {dimension_numbers = #tpu.dot_dimension_numbers<[1], [0], [0], [1], [0, 0, 1, 1], [], []>} : vector<16x16xf32>, vector<16x128xf32>, vector<16x128xf32> -> vector<16x128xf32>
    %cst_32 = arith.constant dense<0.000000e+00> : vector<16x128xf32>
    %45 = tpu.matmul %44, %5, %cst_32 {dimension_numbers = #tpu.dot_dimension_numbers<[1], [0], [0], [1], [0, 0, 1, 1], [], []>} : vector<16x128xf32>, vector<128x128xf32>, vector<16x128xf32> -> vector<16x128xf32>
    %46 = arith.addf %43, %45 : vector<16x128xf32>
    %cst_33 = arith.constant dense<0.000000e+00> : vector<16x128xf32>
    %47 = tpu.matmul %1, %44, %cst_33 {dimension_numbers = #tpu.dot_dimension_numbers<[1], [0], [0], [1], [0, 0, 1, 1], [], []>} : vector<16x16xf32>, vector<16x128xf32>, vector<16x128xf32> -> vector<16x128xf32>
    %cst_34 = arith.constant dense<0.000000e+00> : vector<16x128xf32>
    %48 = tpu.matmul %47, %7, %cst_34 {dimension_numbers = #tpu.dot_dimension_numbers<[1], [0], [0], [1], [0, 0, 1, 1], [], []>} : vector<16x128xf32>, vector<128x128xf32>, vector<16x128xf32> -> vector<16x128xf32>
    %49 = arith.addf %46, %48 : vector<16x128xf32>
    %50 = math.tanh %49 : vector<16x128xf32>
    %cst_35 = arith.constant 5.000000e-02 : f32
    %51 = vector.broadcast %cst_35 : f32 to vector<16x128xf32>
    %52 = arith.mulf %51, %50 : vector<16x128xf32>
    %53 = arith.addf %41, %52 : vector<16x128xf32>
    %cst_36 = arith.constant dense<0.000000e+00> : vector<16x128xf32>
    %54 = tpu.matmul %53, %3, %cst_36 {dimension_numbers = #tpu.dot_dimension_numbers<[1], [0], [0], [1], [0, 0, 1, 1], [], []>} : vector<16x128xf32>, vector<128x128xf32>, vector<16x128xf32> -> vector<16x128xf32>
    %55 = arith.addf %54, %10 : vector<16x128xf32>
    %cst_37 = arith.constant dense<0.000000e+00> : vector<16x128xf32>
    %56 = tpu.matmul %1, %53, %cst_37 {dimension_numbers = #tpu.dot_dimension_numbers<[1], [0], [0], [1], [0, 0, 1, 1], [], []>} : vector<16x16xf32>, vector<16x128xf32>, vector<16x128xf32> -> vector<16x128xf32>
    %cst_38 = arith.constant dense<0.000000e+00> : vector<16x128xf32>
    %57 = tpu.matmul %56, %5, %cst_38 {dimension_numbers = #tpu.dot_dimension_numbers<[1], [0], [0], [1], [0, 0, 1, 1], [], []>} : vector<16x128xf32>, vector<128x128xf32>, vector<16x128xf32> -> vector<16x128xf32>
    %58 = arith.addf %55, %57 : vector<16x128xf32>
    %cst_39 = arith.constant dense<0.000000e+00> : vector<16x128xf32>
    %59 = tpu.matmul %1, %56, %cst_39 {dimension_numbers = #tpu.dot_dimension_numbers<[1], [0], [0], [1], [0, 0, 1, 1], [], []>} : vector<16x16xf32>, vector<16x128xf32>, vector<16x128xf32> -> vector<16x128xf32>
    %cst_40 = arith.constant dense<0.000000e+00> : vector<16x128xf32>
    %60 = tpu.matmul %59, %7, %cst_40 {dimension_numbers = #tpu.dot_dimension_numbers<[1], [0], [0], [1], [0, 0, 1, 1], [], []>} : vector<16x128xf32>, vector<128x128xf32>, vector<16x128xf32> -> vector<16x128xf32>
    %61 = arith.addf %58, %60 : vector<16x128xf32>
    %62 = math.tanh %61 : vector<16x128xf32>
    %cst_41 = arith.constant 1.000000e-01 : f32
    %63 = vector.broadcast %cst_41 : f32 to vector<16x128xf32>
    %64 = arith.mulf %63, %62 : vector<16x128xf32>
    %65 = arith.addf %41, %64 : vector<16x128xf32>
    %cst_42 = arith.constant dense<0.000000e+00> : vector<16x128xf32>
    %66 = tpu.matmul %65, %3, %cst_42 {dimension_numbers = #tpu.dot_dimension_numbers<[1], [0], [0], [1], [0, 0, 1, 1], [], []>} : vector<16x128xf32>, vector<128x128xf32>, vector<16x128xf32> -> vector<16x128xf32>
    %67 = arith.addf %66, %10 : vector<16x128xf32>
    %cst_43 = arith.constant dense<0.000000e+00> : vector<16x128xf32>
    %68 = tpu.matmul %1, %65, %cst_43 {dimension_numbers = #tpu.dot_dimension_numbers<[1], [0], [0], [1], [0, 0, 1, 1], [], []>} : vector<16x16xf32>, vector<16x128xf32>, vector<16x128xf32> -> vector<16x128xf32>
    %cst_44 = arith.constant dense<0.000000e+00> : vector<16x128xf32>
    %69 = tpu.matmul %68, %5, %cst_44 {dimension_numbers = #tpu.dot_dimension_numbers<[1], [0], [0], [1], [0, 0, 1, 1], [], []>} : vector<16x128xf32>, vector<128x128xf32>, vector<16x128xf32> -> vector<16x128xf32>
    %70 = arith.addf %67, %69 : vector<16x128xf32>
    %cst_45 = arith.constant dense<0.000000e+00> : vector<16x128xf32>
    %71 = tpu.matmul %1, %68, %cst_45 {dimension_numbers = #tpu.dot_dimension_numbers<[1], [0], [0], [1], [0, 0, 1, 1], [], []>} : vector<16x16xf32>, vector<16x128xf32>, vector<16x128xf32> -> vector<16x128xf32>
    %cst_46 = arith.constant dense<0.000000e+00> : vector<16x128xf32>
    %72 = tpu.matmul %71, %7, %cst_46 {dimension_numbers = #tpu.dot_dimension_numbers<[1], [0], [0], [1], [0, 0, 1, 1], [], []>} : vector<16x128xf32>, vector<128x128xf32>, vector<16x128xf32> -> vector<16x128xf32>
    %73 = arith.addf %70, %72 : vector<16x128xf32>
    %74 = math.tanh %73 : vector<16x128xf32>
    %cst_47 = arith.constant 5.000000e-02 : f32
    %75 = vector.broadcast %cst_47 : f32 to vector<16x128xf32>
    %76 = arith.mulf %75, %74 : vector<16x128xf32>
    %77 = arith.addf %65, %76 : vector<16x128xf32>
    %c0_48 = arith.constant 0 : index
    %c0_49 = arith.constant 0 : index
    %c0_50 = arith.constant 0 : index
    %78 = vector.load %arg10[%c0_48, %c0_49, %c0_50] : memref<1x16x128xf32, #tpu.memory_space<vmem>>, vector<1x16x128xf32>
    %79 = vector.shape_cast %78 : vector<1x16x128xf32> to vector<16x128xf32>
    %80 = vector.shape_cast %77 : vector<16x128xf32> to vector<1x16x128xf32>
    tpu.vector_store %arg10[%c0_48, %c0_49, %c0_50], %80 {strides = array<i32>} : memref<1x16x128xf32, #tpu.memory_space<vmem>>, vector<1x16x128xf32>,
    %c0_51 = arith.constant 0 : index
    %c0_52 = arith.constant 0 : index
    %81 = vector.load %arg7[%c0_51, %c0_52] : memref<128x128xf32, #tpu.memory_space<vmem>>, vector<128x128xf32>
    %cst_53 = arith.constant dense<0.000000e+00> : vector<16x128xf32>
    %82 = tpu.matmul %77, %81, %cst_53 {dimension_numbers = #tpu.dot_dimension_numbers<[1], [0], [0], [1], [0, 0, 1, 1], [], []>} : vector<16x128xf32>, vector<128x128xf32>, vector<16x128xf32> -> vector<16x128xf32>
    %c0_54 = arith.constant 0 : index
    %c0_55 = arith.constant 0 : index
    %83 = vector.load %arg8[%c0_54, %c0_55] : memref<1x128xf32, #tpu.memory_space<vmem>>, vector<1x128xf32>
    %84 = vector.broadcast %83 : vector<1x128xf32> to vector<16x128xf32>
    %85 = arith.addf %82, %84 : vector<16x128xf32>
    %c0_56 = arith.constant 0 : index
    %c0_57 = arith.constant 0 : index
    %c0_58 = arith.constant 0 : index
    %86 = vector.load %arg9[%c0_56, %c0_57, %c0_58] : memref<1x16x128xf32, #tpu.memory_space<vmem>>, vector<1x16x128xf32>
    %87 = vector.shape_cast %86 : vector<1x16x128xf32> to vector<16x128xf32>
    %88 = vector.shape_cast %85 : vector<16x128xf32> to vector<1x16x128xf32>
    tpu.vector_store %arg9[%c0_56, %c0_57, %c0_58], %88 {strides = array<i32>} : memref<1x16x128xf32, #tpu.memory_space<vmem>>, vector<1x16x128xf32>,
    return
  }
  func.func @transform_0(%arg0: i32) -> (i32, i32, i32) {
    %c0_i32 = arith.constant 0 : i32
    %c0_i32_0 = arith.constant 0 : i32
    %c0_i32_1 = arith.constant 0 : i32
    return %arg0, %c0_i32, %c0_i32_0 : i32, i32, i32
  }
  func.func @transform_1(%arg0: i32) -> (i32, i32, i32) {
    %c0_i32 = arith.constant 0 : i32
    %c0_i32_0 = arith.constant 0 : i32
    %c0_i32_1 = arith.constant 0 : i32
    return %arg0, %c0_i32, %c0_i32_0 : i32, i32, i32
  }
  func.func @transform_2(%arg0: i32) -> (i32, i32) {
    %c0_i32 = arith.constant 0 : i32
    %c0_i32_0 = arith.constant 0 : i32
    %c0_i32_1 = arith.constant 0 : i32
    return %c0_i32, %c0_i32_0 : i32, i32
  }
  func.func @transform_3(%arg0: i32) -> (i32, i32) {
    %c0_i32 = arith.constant 0 : i32
    %c0_i32_0 = arith.constant 0 : i32
    %c0_i32_1 = arith.constant 0 : i32
    return %c0_i32, %c0_i32_0 : i32, i32
  }
  func.func @transform_4(%arg0: i32) -> (i32, i32, i32) {
    %c0_i32 = arith.constant 0 : i32
    %c0_i32_0 = arith.constant 0 : i32
    %c0_i32_1 = arith.constant 0 : i32
    %c0_i32_2 = arith.constant 0 : i32
    return %c0_i32, %c0_i32_0, %c0_i32_1 : i32, i32, i32
  }
  func.func @transform_5(%arg0: i32) -> (i32, i32) {
    %c0_i32 = arith.constant 0 : i32
    %c0_i32_0 = arith.constant 0 : i32
    %c0_i32_1 = arith.constant 0 : i32
    return %c0_i32, %c0_i32_0 : i32, i32
  }
  func.func @transform_6(%arg0: i32) -> (i32, i32) {
    %c0_i32 = arith.constant 0 : i32
    %c0_i32_0 = arith.constant 0 : i32
    %c0_i32_1 = arith.constant 0 : i32
    return %c0_i32, %c0_i32_0 : i32, i32
  }
  func.func @transform_7(%arg0: i32) -> (i32, i32) {
    %c0_i32 = arith.constant 0 : i32
    %c0_i32_0 = arith.constant 0 : i32
    %c0_i32_1 = arith.constant 0 : i32
    return %c0_i32, %c0_i32_0 : i32, i32
  }
  func.func @transform_8(%arg0: i32) -> (i32, i32, i32) {
    %c0_i32 = arith.constant 0 : i32
    %c0_i32_0 = arith.constant 0 : i32
    %c0_i32_1 = arith.constant 0 : i32
    return %arg0, %c0_i32, %c0_i32_0 : i32, i32, i32
  }
  func.func @transform_9(%arg0: i32) -> (i32, i32, i32) {
    %c0_i32 = arith.constant 0 : i32
    %c0_i32_0 = arith.constant 0 : i32
    %c0_i32_1 = arith.constant 0 : i32
    return %arg0, %c0_i32, %c0_i32_0 : i32, i32, i32
  }
}

</mosaic_0001>

<llo_original>
// kernel: tpu_custom_call.1
$region0: #{tpu_custom_call.1}
  #allocation0 [shape = 'u32[]', space=smem, size = 0x4, offset = 0x4, fixed_abs, tag = 'smem constant byte address 0x4 - core index']
  #allocation1 [shape = 'u32[72,128]{1,0:T(1,128)}', space=vmem, size = 0x9000, scoped, tag = 'internal scratch']
  %s0 = inlined_call_operand.hbm [shape: f32[4,16,128], index: 0, kind: input, shape index: {}]
  %s1 = inlined_call_operand.hbm [shape: f32[4,16,16], index: 1, kind: input, shape index: {}]
  %s2 = inlined_call_operand.hbm [shape: f32[128,128], index: 2, kind: input, shape index: {}]
  %s3 = inlined_call_operand.vmem [shape: f32[1,128], index: 3, kind: input, shape index: {}]
  %s4 = inlined_call_operand.hbm [shape: f32[3,128,128], index: 4, kind: input, shape index: {}]
  %s5 = inlined_call_operand.vmem [shape: f32[1,128], index: 5, kind: input, shape index: {}]
  %s6 = inlined_call_operand.hbm [shape: f32[128,128], index: 6, kind: input, shape index: {}]
  %s7 = inlined_call_operand.vmem [shape: f32[1,128], index: 7, kind: input, shape index: {}]
  %s8 = inlined_call_operand.hbm [shape: f32[4,16,128], index: 8, kind: output, shape index: {0}]
  %s9 = inlined_call_operand.hbm [shape: f32[4,16,128], index: 9, kind: output, shape index: {1}]
  %10 = xla_tuple %s8, %s9
  %s11 = sld [smem:[#allocation0]]
  $region93: #{tpu_custom_call.1} parent=0
    _
  %s13 = ssub.s32 1, %s11
  %s14 = scalar_select 0, %s13, %s11
  $region1: #{tpu_custom_call.1} parent=0
    #allocation2 [shape = 'u8[16384]{0}', space=vmem, size = 0x4000, scoped, tag = 'input window, operand 0']
    #allocation3 [shape = 's32[2]{0}', space=sflag, size = 0x8, scoped, tag = 'scoped memory for tpu_custom_call.1']
    #allocation4 [shape = 's32[2]{0}', space=sflag, size = 0x8, scoped, tag = 'scoped memory for tpu_custom_call.1']
    #allocation5 [shape = 'u8[16384]{0}', space=vmem, size = 0x4000, scoped, tag = 'input window, operand 1']
    #allocation6 [shape = 's32[2]{0}', space=sflag, size = 0x8, scoped, tag = 'scoped memory for tpu_custom_call.1']
    #allocation7 [shape = 'u8[65536]{0}', space=vmem, size = 0x10000, scoped, tag = 'input window, operand 2, single buffered']
    #allocation8 [shape = 'u8[196608]{0}', space=vmem, size = 0x30000, scoped, tag = 'input window, operand 4, single buffered']
    #allocation9 [shape = 's32[1]{0}', space=sflag, size = 0x4, scoped, tag = 'scoped memory for tpu_custom_call.1']
    #allocation10 [shape = 'u8[65536]{0}', space=vmem, size = 0x10000, scoped, tag = 'input window, operand 6, single buffered']
    #allocation11 [shape = 'u8[16384]{0}', space=vmem, size = 0x4000, scoped, tag = 'output window, operand 0']
    #allocation12 [shape = 'u8[16384]{0}', space=vmem, size = 0x4000, scoped, tag = 'output window, operand 1']
    #allocation13 [shape = 's32[2]{0}', space=sflag, size = 0x8, scoped, tag = 'scoped memory for tpu_custom_call.1']
    %15 = vsyncpa [#allocation3], 0
    %s16 = scalar_lea.sflag [#allocation3], 1
    %17 = vsyncpa %s16, 0
    %18 = vsyncpa [#allocation6], 0
    %s19 = scalar_lea.sflag [#allocation6], 1
    %20 = vsyncpa %s19, 0
    %21 = vsyncpa [#allocation9], 0
    %22 = vsyncpa [#allocation4], 0
    %s23 = scalar_lea.sflag [#allocation4], 1
    %24 = vsyncpa %s23, 0
    %25 = vsyncpa [#allocation13], 0
    %s26 = scalar_lea.sflag [#allocation13], 1
    %27 = vsyncpa %s26, 0
    loop: start=0, step=1, limit=6
    $region2: #{tpu_custom_call.1} parent=1 // loop_pre_header
      _
    $region3: #{tpu_custom_call.1} parent=1 // loop_header
      %s29 = sphi 0, %s33
      %p30 = scmp.ge.s32.totalorder %s29, 6
      %s39 = sphi 0, %s41
      %s42 = sphi 0, %s39
      %s43 = sphi 0, %s42
      %s59 = sphi 0, %s43
      %s65 = sphi 0, %s67
      %s68 = sphi 0, %s65
      %s69 = sphi 0, %s68
      %s85 = sphi 0, %s69
      %s89 = sphi 0, %s89
      %s91 = sphi 0, %s89
      %s92 = sphi 0, %s91
      %s106 = sphi 0, %s92
      %s110 = sphi 0, %s110
      %s112 = sphi 0, %s110
      %s113 = sphi 0, %s112
      %s127 = sphi 0, %s113
      %s131 = sphi 0, %s131
      %s133 = sphi 0, %s131
      %s134 = sphi 0, %s133
      %s148 = sphi 0, %s134
      %s152 = sphi 0, %s152
      %s154 = sphi 0, %s152
      %s155 = sphi 0, %s154
      %s169 = sphi 0, %s155
      %s173 = sphi 0, %s173
      %s175 = sphi 0, %s173
      %s176 = sphi 0, %s175
      %s190 = sphi 0, %s176
      %s194 = sphi 0, %s194
      %s196 = sphi 0, %s194
      %s197 = sphi 0, %s196
      %s211 = sphi 0, %s197
      %s217 = sphi 0, %s219
      %s220 = sphi 0, %s217
      %s221 = sphi 0, %s220
      %s237 = sphi 0, %s221
      %s243 = sphi 0, %s245
      %s246 = sphi 0, %s243
      %s247 = sphi 0, %s246
      %s263 = sphi 0, %s247
    $region4: #{tpu_custom_call.1} parent=1 // loop_header_branch
      %32 = sbr.rel (%p30) target = $region8
    $region5: #{tpu_custom_call.1} parent=1 // loop_body
      %s34 = ssub.s32 %s29, 1
      %s35 = ssub.s32 %s29, 2
      %s36 = sadd.s32 %s29, 1
      %s37 = ssub.s32 %s29, %s36
      %p38 = scmp.eq.s32.totalorder %s37, 0
      %s40 = sadd.s32 %s39, 1
      %s41 = scalar_select %p38, %s39, %s40
      %p44 = pneg %p38
      %p45 = scmp.eq.s32.totalorder %s29, 3
      %p46 = por %p44, %p45
      %p47 = scmp.ne.s32.totalorder %s39, %s42
      %p48 = scmp.eq.s32.totalorder %s29, 0
      %p49 = por %p47, %p48
      %p50 = scmp.ne.s32.totalorder %s39, %s42
      %p51 = scmp.eq.s32.totalorder %s34, 3
      %p52 = por %p50, %p51
      %p53 = scmp.ne.s32.totalorder %s42, %s43
      %p54 = scmp.eq.s32.totalorder %s34, 0
      %p55 = por %p53, %p54
      %p56 = scmp.ne.s32.totalorder %s42, %s43
      %p57 = scmp.eq.s32.totalorder %s35, 3
      %p58 = por %p56, %p57
      %p60 = scmp.ne.s32.totalorder %s43, %s59
      %p61 = scmp.eq.s32.totalorder %s35, 0
      %p62 = por %p60, %p61
      %s63 = ssub.s32 %s29, %s36
      %p64 = scmp.eq.s32.totalorder %s63, 0
      %s66 = sadd.s32 %s65, 1
      %s67 = scalar_select %p64, %s65, %s66
      %p70 = pneg %p64
      %p71 = scmp.eq.s32.totalorder %s29, 3
      %p72 = por %p70, %p71
      %p73 = scmp.ne.s32.totalorder %s65, %s68
      %p74 = scmp.eq.s32.totalorder %s29, 0
      %p75 = por %p73, %p74
      %p76 = scmp.ne.s32.totalorder %s65, %s68
      %p77 = scmp.eq.s32.totalorder %s34, 3
      %p78 = por %p76, %p77
      %p79 = scmp.ne.s32.totalorder %s68, %s69
      %p80 = scmp.eq.s32.totalorder %s34, 0
      %p81 = por %p79, %p80
      %p82 = scmp.ne.s32.totalorder %s68, %s69
      %p83 = scmp.eq.s32.totalorder %s35, 3
      %p84 = por %p82, %p83
      %p86 = scmp.ne.s32.totalorder %s69, %s85
      %p87 = scmp.eq.s32.totalorder %s35, 0
      %p88 = por %p86, %p87
      %s90 = sadd.s32 %s89, 1
      %p93 = scmp.eq.s32.totalorder %s29, 3
      %p94 = scmp.ne.s32.totalorder %s89, %s91
      %p95 = scmp.eq.s32.totalorder %s29, 0
      %p96 = por %p94, %p95
      %p97 = scmp.ne.s32.totalorder %s89, %s91
      %p98 = scmp.eq.s32.totalorder %s34, 3
      %p99 = por %p97, %p98
      %p100 = scmp.ne.s32.totalorder %s91, %s92
      %p101 = scmp.eq.s32.totalorder %s34, 0
      %p102 = por %p100, %p101
      %p103 = scmp.ne.s32.totalorder %s91, %s92
      %p104 = scmp.eq.s32.totalorder %s35, 3
      %p105 = por %p103, %p104
      %p107 = scmp.ne.s32.totalorder %s92, %s106
      %p108 = scmp.eq.s32.totalorder %s35, 0
      %p109 = por %p107, %p108
      %s111 = sadd.s32 %s110, 1
      %p114 = scmp.eq.s32.totalorder %s29, 3
      %p115 = scmp.ne.s32.totalorder %s110, %s112
      %p116 = scmp.eq.s32.totalorder %s29, 0
      %p117 = por %p115, %p116
      %p118 = scmp.ne.s32.totalorder %s110, %s112
      %p119 = scmp.eq.s32.totalorder %s34, 3
      %p120 = por %p118, %p119
      %p121 = scmp.ne.s32.totalorder %s112, %s113
      %p122 = scmp.eq.s32.totalorder %s34, 0
      %p123 = por %p121, %p122
      %p124 = scmp.ne.s32.totalorder %s112, %s113
      %p125 = scmp.eq.s32.totalorder %s35, 3
      %p126 = por %p124, %p125
      %p128 = scmp.ne.s32.totalorder %s113, %s127
      %p129 = scmp.eq.s32.totalorder %s35, 0
      %p130 = por %p128, %p129
      %s132 = sadd.s32 %s131, 1
      %p135 = scmp.eq.s32.totalorder %s29, 3
      %p136 = scmp.ne.s32.totalorder %s131, %s133
      %p137 = scmp.eq.s32.totalorder %s29, 0
      %p138 = por %p136, %p137
      %p139 = scmp.ne.s32.totalorder %s131, %s133
      %p140 = scmp.eq.s32.totalorder %s34, 3
      %p141 = por %p139, %p140
      %p142 = scmp.ne.s32.totalorder %s133, %s134
      %p143 = scmp.eq.s32.totalorder %s34, 0
      %p144 = por %p142, %p143
      %p145 = scmp.ne.s32.totalorder %s133, %s134
      %p146 = scmp.eq.s32.totalorder %s35, 3
      %p147 = por %p145, %p146
      %p149 = scmp.ne.s32.totalorder %s134, %s148
      %p150 = scmp.eq.s32.totalorder %s35, 0
      %p151 = por %p149, %p150
      %s153 = sadd.s32 %s152, 1
      %p156 = scmp.eq.s32.totalorder %s29, 3
      %p157 = scmp.ne.s32.totalorder %s152, %s154
      %p158 = scmp.eq.s32.totalorder %s29, 0
      %p159 = por %p157, %p158
      %p160 = scmp.ne.s32.totalorder %s152, %s154
      %p161 = scmp.eq.s32.totalorder %s34, 3
      %p162 = por %p160, %p161
      %p163 = scmp.ne.s32.totalorder %s154, %s155
      %p164 = scmp.eq.s32.totalorder %s34, 0
      %p165 = por %p163, %p164
      %p166 = scmp.ne.s32.totalorder %s154, %s155
      %p167 = scmp.eq.s32.totalorder %s35, 3
      %p168 = por %p166, %p167
      %p170 = scmp.ne.s32.totalorder %s155, %s169
      %p171 = scmp.eq.s32.totalorder %s35, 0
      %p172 = por %p170, %p171
      %s174 = sadd.s32 %s173, 1
      %p177 = scmp.eq.s32.totalorder %s29, 3
      %p178 = scmp.ne.s32.totalorder %s173, %s175
      %p179 = scmp.eq.s32.totalorder %s29, 0
      %p180 = por %p178, %p179
      %p181 = scmp.ne.s32.totalorder %s173, %s175
      %p182 = scmp.eq.s32.totalorder %s34, 3
      %p183 = por %p181, %p182
      %p184 = scmp.ne.s32.totalorder %s175, %s176
      %p185 = scmp.eq.s32.totalorder %s34, 0
      %p186 = por %p184, %p185
      %p187 = scmp.ne.s32.totalorder %s175, %s176
      %p188 = scmp.eq.s32.totalorder %s35, 3
      %p189 = por %p187, %p188
      %p191 = scmp.ne.s32.totalorder %s176, %s190
      %p192 = scmp.eq.s32.totalorder %s35, 0
      %p193 = por %p191, %p192
      %s195 = sadd.s32 %s194, 1
      %p198 = scmp.eq.s32.totalorder %s29, 3
      %p199 = scmp.ne.s32.totalorder %s194, %s196
      %p200 = scmp.eq.s32.totalorder %s29, 0
      %p201 = por %p199, %p200
      %p202 = scmp.ne.s32.totalorder %s194, %s196
      %p203 = scmp.eq.s32.totalorder %s34, 3
      %p204 = por %p202, %p203
      %p205 = scmp.ne.s32.totalorder %s196, %s197
      %p206 = scmp.eq.s32.totalorder %s34, 0
      %p207 = por %p205, %p206
      %p208 = scmp.ne.s32.totalorder %s196, %s197
      %p209 = scmp.eq.s32.totalorder %s35, 3
      %p210 = por %p208, %p209
      %p212 = scmp.ne.s32.totalorder %s197, %s211
      %p213 = scmp.eq.s32.totalorder %s35, 0
      %p214 = por %p212, %p213
      %s215 = ssub.s32 %s29, %s36
      %p216 = scmp.eq.s32.totalorder %s215, 0
      %s218 = sadd.s32 %s217, 1
      %s219 = scalar_select %p216, %s217, %s218
      %p222 = pneg %p216
      %p223 = scmp.eq.s32.totalorder %s29, 3
      %p224 = por %p222, %p223
      %p225 = scmp.ne.s32.totalorder %s217, %s220
      %p226 = scmp.eq.s32.totalorder %s29, 0
      %p227 = por %p225, %p226
      %p228 = scmp.ne.s32.totalorder %s217, %s220
      %p229 = scmp.eq.s32.totalorder %s34, 3
      %p230 = por %p228, %p229
      %p231 = scmp.ne.s32.totalorder %s220, %s221
      %p232 = scmp.eq.s32.totalorder %s34, 0
      %p233 = por %p231, %p232
      %p234 = scmp.ne.s32.totalorder %s220, %s221
      %p235 = scmp.eq.s32.totalorder %s35, 3
      %p236 = por %p234, %p235
      %p238 = scmp.ne.s32.totalorder %s221, %s237
      %p239 = scmp.eq.s32.totalorder %s35, 0
      %p240 = por %p238, %p239
      %s241 = ssub.s32 %s29, %s36
      %p242 = scmp.eq.s32.totalorder %s241, 0
      %s244 = sadd.s32 %s243, 1
      %s245 = scalar_select %p242, %s243, %s244
      %p248 = pneg %p242
      %p249 = scmp.eq.s32.totalorder %s29, 3
      %p250 = por %p248, %p249
      %p251 = scmp.ne.s32.totalorder %s243, %s246
      %p252 = scmp.eq.s32.totalorder %s29, 0
      %p253 = por %p251, %p252
      %p254 = scmp.ne.s32.totalorder %s243, %s246
      %p255 = scmp.eq.s32.totalorder %s34, 3
      %p256 = por %p254, %p255
      %p257 = scmp.ne.s32.totalorder %s246, %s247
      %p258 = scmp.eq.s32.totalorder %s34, 0
      %p259 = por %p257, %p258
      %p260 = scmp.ne.s32.totalorder %s246, %s247
      %p261 = scmp.eq.s32.totalorder %s35, 3
      %p262 = por %p260, %p261
      %p264 = scmp.ne.s32.totalorder %s247, %s263
      %p265 = scmp.eq.s32.totalorder %s35, 0
      %p266 = por %p264, %p265
      %p267 = scmp.le.s32.totalorder 1, %s29
      %p268 = scmp.lt.s32.totalorder %s29, 5
      %p269 = pnand %p267, %p268
      %p270 = pneg %p269
      // Predicated region
      $region9: #{tpu_custom_call.1} parent=5 // pred_check
        _
      $region10: #{tpu_custom_call.1} parent=5 // pred_check_branch
        %272 = sbr.rel (%p269) target = $region12
      $region11: #{tpu_custom_call.1} parent=5 // pred_region
        %s273 = ssub.s32 %s29, 1
        // Predicated region
        $region13: #{tpu_custom_call.1} parent=11 // pred_check
          %p274 = pneg %p102
        $region14: #{tpu_custom_call.1} parent=11 // pred_check_branch
          %276 = sbr.rel (%p274) target = $region16
        $region15: #{tpu_custom_call.1} parent=11 // pred_region
          %278 = vsyncadd [#allocation6], 0
          %s279 = sshll.u32 %s2, 4
          %s280 = int_to_ptr.hbm [resolvable:$true] %s279
          %s281 = sshll.u32 [#allocation7], 4
          %s282 = int_to_ptr.vmem [resolvable:$true] %s281
          %287 = dma.hbm_to_vmem [thread:$0]  %s280, 2048, %s282, [#allocation6], 128, 128, 8
        $region16: #{tpu_custom_call.1} parent=11 // pred_fallthru
          _
        // Predicated region
        $region17: #{tpu_custom_call.1} parent=11 // pred_check
          %p288 = pneg %p123
        $region18: #{tpu_custom_call.1} parent=11 // pred_check_branch
          %290 = sbr.rel (%p288) target = $region20
        $region19: #{tpu_custom_call.1} parent=11 // pred_region
          _
        $region20: #{tpu_custom_call.1} parent=11 // pred_fallthru
          _
        // Predicated region
        $region21: #{tpu_custom_call.1} parent=11 // pred_check
          %p291 = pneg %p144
        $region22: #{tpu_custom_call.1} parent=11 // pred_check_branch
          %293 = sbr.rel (%p291) target = $region24
        $region23: #{tpu_custom_call.1} parent=11 // pred_region
          %295 = vsyncadd [#allocation9], 0
          %s296 = sshll.u32 %s4, 4
          %s297 = int_to_ptr.hbm [resolvable:$true] %s296
          %s298 = sshll.u32 [#allocation8], 4
          %s299 = int_to_ptr.vmem [resolvable:$true] %s298
          %304 = dma.hbm_to_vmem [thread:$0]  %s297, 6144, %s299, [#allocation9], 128, 128, 8
        $region24: #{tpu_custom_call.1} parent=11 // pred_fallthru
          _
        // Predicated region
        $region25: #{tpu_custom_call.1} parent=11 // pred_check
          %p305 = pneg %p165
        $region26: #{tpu_custom_call.1} parent=11 // pred_check_branch
          %307 = sbr.rel (%p305) target = $region28
        $region27: #{tpu_custom_call.1} parent=11 // pred_region
          _
        $region28: #{tpu_custom_call.1} parent=11 // pred_fallthru
          _
        // Predicated region
        $region29: #{tpu_custom_call.1} parent=11 // pred_check
          %p308 = pneg %p186
        $region30: #{tpu_custom_call.1} parent=11 // pred_check_branch
          %310 = sbr.rel (%p308) target = $region32
        $region31: #{tpu_custom_call.1} parent=11 // pred_region
          %312 = vsyncadd [#allocation9], 0
          %s313 = sshll.u32 %s6, 4
          %s314 = int_to_ptr.hbm [resolvable:$true] %s313
          %s315 = sshll.u32 [#allocation10], 4
          %s316 = int_to_ptr.vmem [resolvable:$true] %s315
          %321 = dma.hbm_to_vmem [thread:$0]  %s314, 2048, %s316, [#allocation9], 128, 128, 8
        $region32: #{tpu_custom_call.1} parent=11 // pred_fallthru
          _
        // Predicated region
        $region33: #{tpu_custom_call.1} parent=11 // pred_check
          %p322 = pneg %p207
        $region34: #{tpu_custom_call.1} parent=11 // pred_check_branch
          %324 = sbr.rel (%p322) target = $region36
        $region35: #{tpu_custom_call.1} parent=11 // pred_region
          _
        $region36: #{tpu_custom_call.1} parent=11 // pred_fallthru
          _
      $region12: #{tpu_custom_call.1} parent=5 // pred_fallthru
        _
      %p325 = scmp.lt.s32.totalorder %s29, 4
      // Predicated region
      $region37: #{tpu_custom_call.1} parent=5 // pred_check
        %p326 = pneg %p325
      $region38: #{tpu_custom_call.1} parent=5 // pred_check_branch
        %328 = sbr.rel (%p326) target = $region40
      $region39: #{tpu_custom_call.1} parent=5 // pred_region
        // Predicated region
        $region41: #{tpu_custom_call.1} parent=39 // pred_check
          %p329 = pneg %p49
        $region42: #{tpu_custom_call.1} parent=39 // pred_check_branch
          %331 = sbr.rel (%p329) target = $region44
        $region43: #{tpu_custom_call.1} parent=39 // pred_region
          %s332 = sand.u32 %s39, 1
          %s333 = scalar_lea.sflag [#allocation3], %s332
          %s334 = sand.u32 %s39, 1
          %s335 = smul.addr %s334, 16
          %s336 = scalar_lea.vmem [#allocation2], %s335
          %338 = vsyncadd %s333, 0
          %s339 = smul.addr %s29, 2
          %s340 = smul.addr %s339, 8
          %s341 = scalar_lea.hbm %s0, %s340
          %s342 = sshll.u32 %s341, 4
          %s343 = int_to_ptr.hbm [resolvable:$true] %s342
          %s344 = sshll.u32 %s336, 4
          %s345 = int_to_ptr.vmem [resolvable:$true] %s344
          %350 = dma.hbm_to_vmem [thread:$0]  %s343, 256, %s345, %s333, 128, 128, 8
        $region44: #{tpu_custom_call.1} parent=39 // pred_fallthru
          _
        // Predicated region
        $region45: #{tpu_custom_call.1} parent=39 // pred_check
          %p351 = pneg %p75
        $region46: #{tpu_custom_call.1} parent=39 // pred_check_branch
          %353 = sbr.rel (%p351) target = $region48
        $region47: #{tpu_custom_call.1} parent=39 // pred_region
          %s354 = sand.u32 %s29, 1
          %s355 = scalar_lea.sflag [#allocation6], %s354
          %s356 = sand.u32 %s65, 1
          %s357 = smul.addr %s356, 16
          %s358 = scalar_lea.vmem [#allocation5], %s357
          %360 = vsyncadd %s355, 0
          %s361 = smul.addr %s29, 2
          %s362 = smul.addr %s361, 8
          %s363 = scalar_lea.hbm %s1, %s362
          %s364 = sshll.u32 %s363, 4
          %s365 = int_to_ptr.hbm [resolvable:$true] %s364
          %s366 = sshll.u32 %s358, 4
          %s367 = int_to_ptr.vmem [resolvable:$true] %s366
          %372 = dma.hbm_to_vmem [thread:$0]  %s365, 256, %s367, %s355, 128, 128, 8
        $region48: #{tpu_custom_call.1} parent=39 // pred_fallthru
          _
      $region40: #{tpu_custom_call.1} parent=5 // pred_fallthru
        _
      %p373 = scmp.le.s32.totalorder 1, %s29
      %p374 = scmp.lt.s32.totalorder %s29, 5
      %p375 = pnand %p373, %p374
      %p376 = pneg %p375
      // Predicated region
      $region49: #{tpu_custom_call.1} parent=5 // pred_check
        _
      $region50: #{tpu_custom_call.1} parent=5 // pred_check_branch
        %378 = sbr.rel (%p375) target = $region52
      $region51: #{tpu_custom_call.1} parent=5 // pred_region
        %s379 = ssub.s32 %s29, 1
        %s380 = sand.u32 %s42, 1
        %s381 = scalar_lea.sflag [#allocation3], %s380
        %s382 = sand.u32 %s42, 1
        %s383 = smul.addr %s382, 16
        %s384 = scalar_lea.vmem [#allocation2], %s383
        // Predicated region
        $region53: #{tpu_custom_call.1} parent=51 // pred_check
          %p385 = pneg %p55
        $region54: #{tpu_custom_call.1} parent=51 // pred_check_branch
          %387 = sbr.rel (%p385) target = $region56
        $region55: #{tpu_custom_call.1} parent=51 // pred_region
          %389 = dma.done %s381, 256
        $region56: #{tpu_custom_call.1} parent=51 // pred_fallthru
          _
        %s390 = sand.u32 %s34, 1
        %s391 = scalar_lea.sflag [#allocation6], %s390
        %s392 = sand.u32 %s68, 1
        %s393 = smul.addr %s392, 16
        %s394 = scalar_lea.vmem [#allocation5], %s393
        // Predicated region
        $region57: #{tpu_custom_call.1} parent=51 // pred_check
          %p395 = pneg %p81
        $region58: #{tpu_custom_call.1} parent=51 // pred_check_branch
          %397 = sbr.rel (%p395) target = $region60
        $region59: #{tpu_custom_call.1} parent=51 // pred_region
          %399 = dma.done %s391, 256
        $region60: #{tpu_custom_call.1} parent=51 // pred_fallthru
          _
        // Predicated region
        $region61: #{tpu_custom_call.1} parent=51 // pred_check
          %p400 = pneg %p102
        $region62: #{tpu_custom_call.1} parent=51 // pred_check_branch
          %402 = sbr.rel (%p400) target = $region64
        $region63: #{tpu_custom_call.1} parent=51 // pred_region
          %404 = dma.done [#allocation6], 2048
        $region64: #{tpu_custom_call.1} parent=51 // pred_fallthru
          _
        // Predicated region
        $region65: #{tpu_custom_call.1} parent=51 // pred_check
          %p405 = pneg %p144
        $region66: #{tpu_custom_call.1} parent=51 // pred_check_branch
          %407 = sbr.rel (%p405) target = $region68
        $region67: #{tpu_custom_call.1} parent=51 // pred_region
          %409 = dma.done [#allocation9], 6144
        $region68: #{tpu_custom_call.1} parent=51 // pred_fallthru
          _
        // Predicated region
        $region69: #{tpu_custom_call.1} parent=51 // pred_check
          %p410 = pneg %p186
        $region70: #{tpu_custom_call.1} parent=51 // pred_check_branch
          %412 = sbr.rel (%p410) target = $region72
        $region71: #{tpu_custom_call.1} parent=51 // pred_region
          %414 = dma.done [#allocation9], 2048
        $region72: #{tpu_custom_call.1} parent=51 // pred_fallthru
          _
        %s415 = sand.u32 %s42, 1
        %s416 = scalar_lea.sflag [#allocation3], %s415
        %s417 = sand.u32 %s42, 1
        %s418 = smul.addr %s417, 16
        %s419 = scalar_lea.vmem [#allocation2], %s418
        %p420 = pneg %p55
        %p421 = pneg %p52
        %s422 = sand.u32 %s34, 1
        %s423 = scalar_lea.sflag [#allocation6], %s422
        %s424 = sand.u32 %s68, 1
        %s425 = smul.addr %s424, 16
        %s426 = scalar_lea.vmem [#allocation5], %s425
        %p427 = pneg %p81
        %p428 = pneg %p78
        %p429 = pneg %p102
        %p430 = pneg %p99
        %p431 = pneg %p123
        %p432 = pneg %p120
        %p433 = pneg %p144
        %p434 = pneg %p141
        %p435 = pneg %p165
        %p436 = pneg %p162
        %p437 = pneg %p186
        %p438 = pneg %p183
        %p439 = pneg %p207
        %p440 = pneg %p204
        %p441 = pneg %p233
        %p442 = pneg %p230
        %s443 = sand.u32 %s220, 1
        %s444 = scalar_lea.sflag [#allocation4], %s443
        %s445 = sand.u32 %s220, 1
        %s446 = smul.addr %s445, 16
        %s447 = scalar_lea.vmem [#allocation11], %s446
        %p448 = pneg %p259
        %p449 = pneg %p256
        %s450 = sand.u32 %s246, 1
        %s451 = scalar_lea.sflag [#allocation13], %s450
        %s452 = sand.u32 %s246, 1
        %s453 = smul.addr %s452, 16
        %s454 = scalar_lea.vmem [#allocation12], %s453
        %v455 = vld [vmem:[%s394] sm:$0xff]
        %v456 = vld [vmem:[%s394 + $0x8] sm:$0xff]
        %v457 = vld [vmem:[#allocation8] sm:$0xff]
        %v458 = vld [vmem:[#allocation8 + $0x8] sm:$0xff]
        %v459 = vld [vmem:[#allocation8 + $0x10] sm:$0xff]
        %v460 = vld [vmem:[#allocation8 + $0x18] sm:$0xff]
        %v461 = vld [vmem:[#allocation8 + $0x20] sm:$0xff]
        %v462 = vld [vmem:[#allocation8 + $0x28] sm:$0xff]
        %v463 = vld [vmem:[#allocation8 + $0x30] sm:$0xff]
        %v464 = vld [vmem:[#allocation8 + $0x38] sm:$0xff]
        %v465 = vld [vmem:[#allocation8 + $0x40] sm:$0xff]
        %v466 = vld [vmem:[#allocation8 + $0x48] sm:$0xff]
        %v467 = vld [vmem:[#allocation8 + $0x50] sm:$0xff]
        %v468 = vld [vmem:[#allocation8 + $0x58] sm:$0xff]
        %v469 = vld [vmem:[#allocation8 + $0x60] sm:$0xff]
        %v470 = vld [vmem:[#allocation8 + $0x68] sm:$0xff]
        %v471 = vld [vmem:[#allocation8 + $0x70] sm:$0xff]
        %v472 = vld [vmem:[#allocation8 + $0x78] sm:$0xff]
        %s473 = scalar_lea.vmem [#allocation8], 128
        %v474 = vld [vmem:[%s473] sm:$0xff]
        %v475 = vld [vmem:[%s473 + $0x8] sm:$0xff]
        %v476 = vld [vmem:[%s473 + $0x10] sm:$0xff]
        %v477 = vld [vmem:[%s473 + $0x18] sm:$0xff]
        %v478 = vld [vmem:[%s473 + $0x20] sm:$0xff]
        %v479 = vld [vmem:[%s473 + $0x28] sm:$0xff]
        %v480 = vld [vmem:[%s473 + $0x30] sm:$0xff]
        %v481 = vld [vmem:[%s473 + $0x38] sm:$0xff]
        %v482 = vld [vmem:[%s473 + $0x40] sm:$0xff]
        %v483 = vld [vmem:[%s473 + $0x48] sm:$0xff]
        %v484 = vld [vmem:[%s473 + $0x50] sm:$0xff]
        %v485 = vld [vmem:[%s473 + $0x58] sm:$0xff]
        %v486 = vld [vmem:[%s473 + $0x60] sm:$0xff]
        %v487 = vld [vmem:[%s473 + $0x68] sm:$0xff]
        %v488 = vld [vmem:[%s473 + $0x70] sm:$0xff]
        %v489 = vld [vmem:[%s473 + $0x78] sm:$0xff]
        %s490 = scalar_lea.vmem [#allocation8], 256
        %v491 = vld [vmem:[%s490] sm:$0xff]
        %v492 = vld [vmem:[%s490 + $0x8] sm:$0xff]
        %v493 = vld [vmem:[%s490 + $0x10] sm:$0xff]
        %v494 = vld [vmem:[%s490 + $0x18] sm:$0xff]
        %v495 = vld [vmem:[%s490 + $0x20] sm:$0xff]
        %v496 = vld [vmem:[%s490 + $0x28] sm:$0xff]
        %v497 = vld [vmem:[%s490 + $0x30] sm:$0xff]
        %v498 = vld [vmem:[%s490 + $0x38] sm:$0xff]
        %v499 = vld [vmem:[%s490 + $0x40] sm:$0xff]
        %v500 = vld [vmem:[%s490 + $0x48] sm:$0xff]
        %v501 = vld [vmem:[%s490 + $0x50] sm:$0xff]
        %v502 = vld [vmem:[%s490 + $0x58] sm:$0xff]
        %v503 = vld [vmem:[%s490 + $0x60] sm:$0xff]
        %v504 = vld [vmem:[%s490 + $0x68] sm:$0xff]
        %v505 = vld [vmem:[%s490 + $0x70] sm:$0xff]
        %v506 = vld [vmem:[%s490 + $0x78] sm:$0xff]
        %v507 = vld [vmem:[%s5] sm:$0x1]
        %v509 = vperm.slane %v507, 0
        %v511 = vld [vmem:[%s384] sm:$0xff]
        %v512 = vld [vmem:[%s384 + $0x8] sm:$0xff]
        %v513 = vld [vmem:[#allocation7] sm:$0xff]
        %v514 = vld [vmem:[#allocation7 + $0x8] sm:$0xff]
        %v515 = vld [vmem:[#allocation7 + $0x10] sm:$0xff]
        %v516 = vld [vmem:[#allocation7 + $0x18] sm:$0xff]
        %v517 = vld [vmem:[#allocation7 + $0x20] sm:$0xff]
        %v518 = vld [vmem:[#allocation7 + $0x28] sm:$0xff]
        %v519 = vld [vmem:[#allocation7 + $0x30] sm:$0xff]
        %v520 = vld [vmem:[#allocation7 + $0x38] sm:$0xff]
        %v521 = vld [vmem:[#allocation7 + $0x40] sm:$0xff]
        %v522 = vld [vmem:[#allocation7 + $0x48] sm:$0xff]
        %v523 = vld [vmem:[#allocation7 + $0x50] sm:$0xff]
        %v524 = vld [vmem:[#allocation7 + $0x58] sm:$0xff]
        %v525 = vld [vmem:[#allocation7 + $0x60] sm:$0xff]
        %v526 = vld [vmem:[#allocation7 + $0x68] sm:$0xff]
        %v527 = vld [vmem:[#allocation7 + $0x70] sm:$0xff]
        %v528 = vld [vmem:[#allocation7 + $0x78] sm:$0xff]
        %v529 = vld [vmem:[%s3] sm:$0x1]
        %v531 = vperm.slane %v529, 0
        %533 = vmatpush.msra.mxu0 %v528
        %534 = vmatpush.msra.mxu0 %v527
        %535 = vmatpush.msra.mxu0 %v526
        %536 = vmatpush.msra.mxu0 %v525
        %537 = vmatpush.msra.mxu0 %v524
        %538 = vmatpush.msra.mxu0 %v523
        %539 = vmatpush.msra.mxu0 %v522
        %540 = vmatpush.msra.mxu0 %v521
        %541 = vmatpush.msra.mxu0 %v520
        %542 = vmatpush.msra.mxu0 %v519
        %543 = vmatpush.msra.mxu0 %v518
        %544 = vmatpush.msra.mxu0 %v517
        %545 = vmatpush.msra.mxu0 %v516
        %546 = vmatpush.msra.mxu0 %v515
        %547 = vmatpush.msra.mxu0 %v514
        %548 = vmatpush.msra.mxu0 %v513
        %549 = vmatmul.f32.gmra.mxu0 %v511
        %v550 = vpop.f32.mrf.mxu0
        %v551 = vadd.f32 %v531, %v550
        %552 = vmatmul.f32.gmra.mxu0 %v512
        %v553 = vpop.f32.mrf.mxu0
        %v554 = vadd.f32 %v531, %v553
        %555 = vdwg.mxu0
        %556 = vmatpush.msra.mxu0 %v472
        %557 = vmatpush.msra.mxu0 %v471
        %558 = vmatpush.msra.mxu0 %v470
        %559 = vmatpush.msra.mxu0 %v469
        %560 = vmatpush.msra.mxu0 %v468
        %561 = vmatpush.msra.mxu0 %v467
        %562 = vmatpush.msra.mxu0 %v466
        %563 = vmatpush.msra.mxu0 %v465
        %564 = vmatpush.msra.mxu0 %v464
        %565 = vmatpush.msra.mxu0 %v463
        %566 = vmatpush.msra.mxu0 %v462
        %567 = vmatpush.msra.mxu0 %v461
        %568 = vmatpush.msra.mxu0 %v460
        %569 = vmatpush.msra.mxu0 %v459
        %570 = vmatpush.msra.mxu0 %v458
        %571 = vmatpush.msra.mxu0 %v457
        %572 = vmatmul.f32.gmra.mxu0 %v551
        %v573 = vpop.f32.mrf.mxu0
        %v574 = vadd.f32 %v509, %v573
        %575 = vmatmul.f32.gmra.mxu0 %v554
        %v576 = vpop.f32.mrf.mxu0
        %v577 = vadd.f32 %v509, %v576
        %578 = vdwg.mxu0
        %vm579 = vcmask 130048
        %v581 = vsel %vm579, %v455, 0
        %v584 = vsel %vm579, %v456, 0
        %586 = vmatpush.msra.mxu0 0.0
        %587 = vmatpush.msra.mxu0 0.0
        %588 = vmatpush.msra.mxu0 0.0
        %589 = vmatpush.msra.mxu0 0.0
        %590 = vmatpush.msra.mxu0 0.0
        %591 = vmatpush.msra.mxu0 0.0
        %592 = vmatpush.msra.mxu0 0.0
        %593 = vmatpush.msra.mxu0 0.0
        %594 = vmatpush.msra.mxu0 0.0
        %595 = vmatpush.msra.mxu0 0.0
        %596 = vmatpush.msra.mxu0 0.0
        %597 = vmatpush.msra.mxu0 0.0
        %598 = vmatpush.msra.mxu0 0.0
        %599 = vmatpush.msra.mxu0 0.0
        %600 = vmatpush.msra.mxu0 %v554
        %601 = vmatpush.msra.mxu0 %v551
        %602 = vmatmul.f32.gmra.mxu0 %v581
        %v603 = vpop.f32.mrf.mxu0
        %v604 = vadd.f32 0.0, %v603
        %605 = vmatmul.f32.gmra.mxu0 %v584
        %v606 = vpop.f32.mrf.mxu0
        %v607 = vadd.f32 0.0, %v606
        %608 = vdwg.mxu0
        %609 = vmatpush.msra.mxu0 %v489
        %610 = vmatpush.msra.mxu0 %v488
        %611 = vmatpush.msra.mxu0 %v487
        %612 = vmatpush.msra.mxu0 %v486
        %613 = vmatpush.msra.mxu0 %v485
        %614 = vmatpush.msra.mxu0 %v484
        %615 = vmatpush.msra.mxu0 %v483
        %616 = vmatpush.msra.mxu0 %v482
        %617 = vmatpush.msra.mxu0 %v481
        %618 = vmatpush.msra.mxu0 %v480
        %619 = vmatpush.msra.mxu0 %v479
        %620 = vmatpush.msra.mxu0 %v478
        %621 = vmatpush.msra.mxu0 %v477
        %622 = vmatpush.msra.mxu0 %v476
        %623 = vmatpush.msra.mxu0 %v475
        %624 = vmatpush.msra.mxu0 %v474
        %625 = vmatmul.f32.gmra.mxu0 %v604
        %v626 = vpop.f32.mrf.mxu0
        %v627 = vadd.f32 0.0, %v626
        %628 = vmatmul.f32.gmra.mxu0 %v607
        %v629 = vpop.f32.mrf.mxu0
        %v630 = vadd.f32 0.0, %v629
        %631 = vdwg.mxu0
        %v632 = vadd.f32 %v574, %v627
        %v633 = vadd.f32 %v577, %v630
        %634 = vmatpush.msra.mxu0 0.0
        %635 = vmatpush.msra.mxu0 0.0
        %636 = vmatpush.msra.mxu0 0.0
        %637 = vmatpush.msra.mxu0 0.0
        %638 = vmatpush.msra.mxu0 0.0
        %639 = vmatpush.msra.mxu0 0.0
        %640 = vmatpush.msra.mxu0 0.0
        %641 = vmatpush.msra.mxu0 0.0
        %642 = vmatpush.msra.mxu0 0.0
        %643 = vmatpush.msra.mxu0 0.0
        %644 = vmatpush.msra.mxu0 0.0
        %645 = vmatpush.msra.mxu0 0.0
        %646 = vmatpush.msra.mxu0 0.0
        %647 = vmatpush.msra.mxu0 0.0
        %648 = vmatpush.msra.mxu0 %v607
        %649 = vmatpush.msra.mxu0 %v604
        %650 = vmatmul.f32.gmra.mxu0 %v581
        %v651 = vpop.f32.mrf.mxu0
        %v652 = vadd.f32 0.0, %v651
        %653 = vmatmul.f32.gmra.mxu0 %v584
        %v654 = vpop.f32.mrf.mxu0
        %v655 = vadd.f32 0.0, %v654
        %656 = vdwg.mxu0
        %657 = vmatpush.msra.mxu0 %v506
        %658 = vmatpush.msra.mxu0 %v505
        %659 = vmatpush.msra.mxu0 %v504
        %660 = vmatpush.msra.mxu0 %v503
        %661 = vmatpush.msra.mxu0 %v502
        %662 = vmatpush.msra.mxu0 %v501
        %663 = vmatpush.msra.mxu0 %v500
        %664 = vmatpush.msra.mxu0 %v499
        %665 = vmatpush.msra.mxu0 %v498
        %666 = vmatpush.msra.mxu0 %v497
        %667 = vmatpush.msra.mxu0 %v496
        %668 = vmatpush.msra.mxu0 %v495
        %669 = vmatpush.msra.mxu0 %v494
        %670 = vmatpush.msra.mxu0 %v493
        %671 = vmatpush.msra.mxu0 %v492
        %672 = vmatpush.msra.mxu0 %v491
        %673 = vmatmul.f32.gmra.mxu0 %v652
        %v674 = vpop.f32.mrf.mxu0
        %v675 = vadd.f32 0.0, %v674
        %676 = vmatmul.f32.gmra.mxu0 %v655
        %v677 = vpop.f32.mrf.mxu0
        %v678 = vadd.f32 0.0, %v677
        %679 = vdwg.mxu0
        %v680 = vadd.f32 %v632, %v675
        %v681 = vadd.f32 %v633, %v678
        %v682 = vtanh.pop %v680
        %v683 = vtanh.pop %v681
        %v684 = vmul.f32 %v682, 0.05
        %v685 = vmul.f32 %v683, 0.05
        %v686 = vadd.f32 %v551, %v684
        %v687 = vadd.f32 %v554, %v685
        %688 = vmatpush.msra.mxu0 %v472
        %689 = vmatpush.msra.mxu0 %v471
        %690 = vmatpush.msra.mxu0 %v470
        %691 = vmatpush.msra.mxu0 %v469
        %692 = vmatpush.msra.mxu0 %v468
        %693 = vmatpush.msra.mxu0 %v467
        %694 = vmatpush.msra.mxu0 %v466
        %695 = vmatpush.msra.mxu0 %v465
        %696 = vmatpush.msra.mxu0 %v464
        %697 = vmatpush.msra.mxu0 %v463
        %698 = vmatpush.msra.mxu0 %v462
        %699 = vmatpush.msra.mxu0 %v461
        %700 = vmatpush.msra.mxu0 %v460
        %701 = vmatpush.msra.mxu0 %v459
        %702 = vmatpush.msra.mxu0 %v458
        %703 = vmatpush.msra.mxu0 %v457
        %704 = vmatmul.f32.gmra.mxu0 %v686
        %v705 = vpop.f32.mrf.mxu0
        %v706 = vadd.f32 %v509, %v705
        %707 = vmatmul.f32.gmra.mxu0 %v687
        %v708 = vpop.f32.mrf.mxu0
        %v709 = vadd.f32 %v509, %v708
        %710 = vdwg.mxu0
        %711 = vmatpush.msra.mxu0 0.0
        %712 = vmatpush.msra.mxu0 0.0
        %713 = vmatpush.msra.mxu0 0.0
        %714 = vmatpush.msra.mxu0 0.0
        %715 = vmatpush.msra.mxu0 0.0
        %716 = vmatpush.msra.mxu0 0.0
        %717 = vmatpush.msra.mxu0 0.0
        %718 = vmatpush.msra.mxu0 0.0
        %719 = vmatpush.msra.mxu0 0.0
        %720 = vmatpush.msra.mxu0 0.0
        %721 = vmatpush.msra.mxu0 0.0
        %722 = vmatpush.msra.mxu0 0.0
        %723 = vmatpush.msra.mxu0 0.0
        %724 = vmatpush.msra.mxu0 0.0
        %725 = vmatpush.msra.mxu0 %v687
        %726 = vmatpush.msra.mxu0 %v686
        %727 = vmatmul.f32.gmra.mxu0 %v581
        %v728 = vpop.f32.mrf.mxu0
        %v729 = vadd.f32 0.0, %v728
        %730 = vmatmul.f32.gmra.mxu0 %v584
        %v731 = vpop.f32.mrf.mxu0
        %v732 = vadd.f32 0.0, %v731
        %733 = vdwg.mxu0
        %734 = vmatpush.msra.mxu0 %v489
        %735 = vmatpush.msra.mxu0 %v488
        %736 = vmatpush.msra.mxu0 %v487
        %737 = vmatpush.msra.mxu0 %v486
        %738 = vmatpush.msra.mxu0 %v485
        %739 = vmatpush.msra.mxu0 %v484
        %740 = vmatpush.msra.mxu0 %v483
        %741 = vmatpush.msra.mxu0 %v482
        %742 = vmatpush.msra.mxu0 %v481
        %743 = vmatpush.msra.mxu0 %v480
        %744 = vmatpush.msra.mxu0 %v479
        %745 = vmatpush.msra.mxu0 %v478
        %746 = vmatpush.msra.mxu0 %v477
        %747 = vmatpush.msra.mxu0 %v476
        %748 = vmatpush.msra.mxu0 %v475
        %749 = vmatpush.msra.mxu0 %v474
        %750 = vmatmul.f32.gmra.mxu0 %v729
        %v751 = vpop.f32.mrf.mxu0
        %v752 = vadd.f32 0.0, %v751
        %753 = vmatmul.f32.gmra.mxu0 %v732
        %v754 = vpop.f32.mrf.mxu0
        %v755 = vadd.f32 0.0, %v754
        %756 = vdwg.mxu0
        %v757 = vadd.f32 %v706, %v752
        %v758 = vadd.f32 %v709, %v755
        %759 = vmatpush.msra.mxu0 0.0
        %760 = vmatpush.msra.mxu0 0.0
        %761 = vmatpush.msra.mxu0 0.0
        %762 = vmatpush.msra.mxu0 0.0
        %763 = vmatpush.msra.mxu0 0.0
        %764 = vmatpush.msra.mxu0 0.0
        %765 = vmatpush.msra.mxu0 0.0
        %766 = vmatpush.msra.mxu0 0.0
        %767 = vmatpush.msra.mxu0 0.0
        %768 = vmatpush.msra.mxu0 0.0
        %769 = vmatpush.msra.mxu0 0.0
        %770 = vmatpush.msra.mxu0 0.0
        %771 = vmatpush.msra.mxu0 0.0
        %772 = vmatpush.msra.mxu0 0.0
        %773 = vmatpush.msra.mxu0 %v732
        %774 = vmatpush.msra.mxu0 %v729
        %775 = vmatmul.f32.gmra.mxu0 %v581
        %v776 = vpop.f32.mrf.mxu0
        %v777 = vadd.f32 0.0, %v776
        %778 = vmatmul.f32.gmra.mxu0 %v584
        %v779 = vpop.f32.mrf.mxu0
        %v780 = vadd.f32 0.0, %v779
        %781 = vdwg.mxu0
        %782 = vmatpush.msra.mxu0 %v506
        %783 = vmatpush.msra.mxu0 %v505
        %784 = vmatpush.msra.mxu0 %v504
        %785 = vmatpush.msra.mxu0 %v503
        %786 = vmatpush.msra.mxu0 %v502
        %787 = vmatpush.msra.mxu0 %v501
        %788 = vmatpush.msra.mxu0 %v500
        %789 = vmatpush.msra.mxu0 %v499
        %790 = vmatpush.msra.mxu0 %v498
        %791 = vmatpush.msra.mxu0 %v497
        %792 = vmatpush.msra.mxu0 %v496
        %793 = vmatpush.msra.mxu0 %v495
        %794 = vmatpush.msra.mxu0 %v494
        %795 = vmatpush.msra.mxu0 %v493
        %796 = vmatpush.msra.mxu0 %v492
        %797 = vmatpush.msra.mxu0 %v491
        %798 = vmatmul.f32.gmra.mxu0 %v777
        %v799 = vpop.f32.mrf.mxu0
        %v800 = vadd.f32 0.0, %v799
        %801 = vmatmul.f32.gmra.mxu0 %v780
        %v802 = vpop.f32.mrf.mxu0
        %v803 = vadd.f32 0.0, %v802
        %804 = vdwg.mxu0
        %v805 = vadd.f32 %v757, %v800
        %v806 = vadd.f32 %v758, %v803
        %v807 = vtanh.pop %v805
        %v808 = vtanh.pop %v806
        %v809 = vmul.f32 %v807, 0.1
        %v810 = vmul.f32 %v808, 0.1
        %v811 = vadd.f32 %v551, %v809
        %v812 = vadd.f32 %v554, %v810
        %813 = vmatpush.msra.mxu0 %v472
        %814 = vmatpush.msra.mxu0 %v471
        %815 = vmatpush.msra.mxu0 %v470
        %816 = vmatpush.msra.mxu0 %v469
        %817 = vmatpush.msra.mxu0 %v468
        %818 = vmatpush.msra.mxu0 %v467
        %819 = vmatpush.msra.mxu0 %v466
        %820 = vmatpush.msra.mxu0 %v465
        %821 = vmatpush.msra.mxu0 %v464
        %822 = vmatpush.msra.mxu0 %v463
        %823 = vmatpush.msra.mxu0 %v462
        %824 = vmatpush.msra.mxu0 %v461
        %825 = vmatpush.msra.mxu0 %v460
        %826 = vmatpush.msra.mxu0 %v459
        %827 = vmatpush.msra.mxu0 %v458
        %828 = vmatpush.msra.mxu0 %v457
        %829 = vmatmul.f32.gmra.mxu0 %v811
        %v830 = vpop.f32.mrf.mxu0
        %v831 = vadd.f32 %v509, %v830
        %832 = vmatmul.f32.gmra.mxu0 %v812
        %v833 = vpop.f32.mrf.mxu0
        %v834 = vadd.f32 %v509, %v833
        %835 = vdwg.mxu0
        %836 = vmatpush.msra.mxu0 0.0
        %837 = vmatpush.msra.mxu0 0.0
        %838 = vmatpush.msra.mxu0 0.0
        %839 = vmatpush.msra.mxu0 0.0
        %840 = vmatpush.msra.mxu0 0.0
        %841 = vmatpush.msra.mxu0 0.0
        %842 = vmatpush.msra.mxu0 0.0
        %843 = vmatpush.msra.mxu0 0.0
        %844 = vmatpush.msra.mxu0 0.0
        %845 = vmatpush.msra.mxu0 0.0
        %846 = vmatpush.msra.mxu0 0.0
        %847 = vmatpush.msra.mxu0 0.0
        %848 = vmatpush.msra.mxu0 0.0
        %849 = vmatpush.msra.mxu0 0.0
        %850 = vmatpush.msra.mxu0 %v812
        %851 = vmatpush.msra.mxu0 %v811
        %852 = vmatmul.f32.gmra.mxu0 %v581
        %v853 = vpop.f32.mrf.mxu0
        %v854 = vadd.f32 0.0, %v853
        %855 = vmatmul.f32.gmra.mxu0 %v584
        %v856 = vpop.f32.mrf.mxu0
        %v857 = vadd.f32 0.0, %v856
        %858 = vdwg.mxu0
        %859 = vmatpush.msra.mxu0 %v489
        %860 = vmatpush.msra.mxu0 %v488
        %861 = vmatpush.msra.mxu0 %v487
        %862 = vmatpush.msra.mxu0 %v486
        %863 = vmatpush.msra.mxu0 %v485
        %864 = vmatpush.msra.mxu0 %v484
        %865 = vmatpush.msra.mxu0 %v483
        %866 = vmatpush.msra.mxu0 %v482
        %867 = vmatpush.msra.mxu0 %v481
        %868 = vmatpush.msra.mxu0 %v480
        %869 = vmatpush.msra.mxu0 %v479
        %870 = vmatpush.msra.mxu0 %v478
        %871 = vmatpush.msra.mxu0 %v477
        %872 = vmatpush.msra.mxu0 %v476
        %873 = vmatpush.msra.mxu0 %v475
        %874 = vmatpush.msra.mxu0 %v474
        %875 = vmatmul.f32.gmra.mxu0 %v854
        %v876 = vpop.f32.mrf.mxu0
        %v877 = vadd.f32 0.0, %v876
        %878 = vmatmul.f32.gmra.mxu0 %v857
        %v879 = vpop.f32.mrf.mxu0
        %v880 = vadd.f32 0.0, %v879
        %881 = vdwg.mxu0
        %v882 = vadd.f32 %v831, %v877
        %v883 = vadd.f32 %v834, %v880
        %884 = vmatpush.msra.mxu0 0.0
        %885 = vmatpush.msra.mxu0 0.0
        %886 = vmatpush.msra.mxu0 0.0
        %887 = vmatpush.msra.mxu0 0.0
        %888 = vmatpush.msra.mxu0 0.0
        %889 = vmatpush.msra.mxu0 0.0
        %890 = vmatpush.msra.mxu0 0.0
        %891 = vmatpush.msra.mxu0 0.0
        %892 = vmatpush.msra.mxu0 0.0
        %893 = vmatpush.msra.mxu0 0.0
        %894 = vmatpush.msra.mxu0 0.0
        %895 = vmatpush.msra.mxu0 0.0
        %896 = vmatpush.msra.mxu0 0.0
        %897 = vmatpush.msra.mxu0 0.0
        %898 = vmatpush.msra.mxu0 %v857
        %899 = vmatpush.msra.mxu0 %v854
        %900 = vmatmul.f32.gmra.mxu0 %v581
        %v901 = vpop.f32.mrf.mxu0
        %v902 = vadd.f32 0.0, %v901
        %903 = vmatmul.f32.gmra.mxu0 %v584
        %v904 = vpop.f32.mrf.mxu0
        %v905 = vadd.f32 0.0, %v904
        %906 = vdwg.mxu0
        %907 = vmatpush.msra.mxu0 %v506
        %908 = vmatpush.msra.mxu0 %v505
        %909 = vmatpush.msra.mxu0 %v504
        %910 = vmatpush.msra.mxu0 %v503
        %911 = vmatpush.msra.mxu0 %v502
        %912 = vmatpush.msra.mxu0 %v501
        %913 = vmatpush.msra.mxu0 %v500
        %914 = vmatpush.msra.mxu0 %v499
        %915 = vmatpush.msra.mxu0 %v498
        %916 = vmatpush.msra.mxu0 %v497
        %917 = vmatpush.msra.mxu0 %v496
        %918 = vmatpush.msra.mxu0 %v495
        %919 = vmatpush.msra.mxu0 %v494
        %920 = vmatpush.msra.mxu0 %v493
        %921 = vmatpush.msra.mxu0 %v492
        %922 = vmatpush.msra.mxu0 %v491
        %923 = vmatmul.f32.gmra.mxu0 %v902
        %v924 = vpop.f32.mrf.mxu0
        %v925 = vadd.f32 0.0, %v924
        %926 = vmatmul.f32.gmra.mxu0 %v905
        %v927 = vpop.f32.mrf.mxu0
        %v928 = vadd.f32 0.0, %v927
        %929 = vdwg.mxu0
        %v930 = vadd.f32 %v882, %v925
        %v931 = vadd.f32 %v883, %v928
        %v932 = vtanh.pop %v930
        %v933 = vtanh.pop %v931
        %v934 = vmul.f32 %v932, 0.05
        %v935 = vmul.f32 %v933, 0.05
        %v936 = vadd.f32 %v811, %v934
        %v937 = vadd.f32 %v812, %v935
        %938 = vmatpush.msra.mxu0 %v472
        %939 = vmatpush.msra.mxu0 %v471
        %940 = vmatpush.msra.mxu0 %v470
        %941 = vmatpush.msra.mxu0 %v469
        %942 = vmatpush.msra.mxu0 %v468
        %943 = vmatpush.msra.mxu0 %v467
        %944 = vmatpush.msra.mxu0 %v466
        %945 = vmatpush.msra.mxu0 %v465
        %946 = vmatpush.msra.mxu0 %v464
        %947 = vmatpush.msra.mxu0 %v463
        %948 = vmatpush.msra.mxu0 %v462
        %949 = vmatpush.msra.mxu0 %v461
        %950 = vmatpush.msra.mxu0 %v460
        %951 = vmatpush.msra.mxu0 %v459
        %952 = vmatpush.msra.mxu0 %v458
        %953 = vmatpush.msra.mxu0 %v457
        %954 = vmatmul.f32.gmra.mxu0 %v936
        %v955 = vpop.f32.mrf.mxu0
        %v956 = vadd.f32 %v509, %v955
        %957 = vmatmul.f32.gmra.mxu0 %v937
        %v958 = vpop.f32.mrf.mxu0
        %v959 = vadd.f32 %v509, %v958
        %960 = vdwg.mxu0
        %961 = vmatpush.msra.mxu0 0.0
        %962 = vmatpush.msra.mxu0 0.0
        %963 = vmatpush.msra.mxu0 0.0
        %964 = vmatpush.msra.mxu0 0.0
        %965 = vmatpush.msra.mxu0 0.0
        %966 = vmatpush.msra.mxu0 0.0
        %967 = vmatpush.msra.mxu0 0.0
        %968 = vmatpush.msra.mxu0 0.0
        %969 = vmatpush.msra.mxu0 0.0
        %970 = vmatpush.msra.mxu0 0.0
        %971 = vmatpush.msra.mxu0 0.0
        %972 = vmatpush.msra.mxu0 0.0
        %973 = vmatpush.msra.mxu0 0.0
        %974 = vmatpush.msra.mxu0 0.0
        %975 = vmatpush.msra.mxu0 %v937
        %976 = vmatpush.msra.mxu0 %v936
        %977 = vmatmul.f32.gmra.mxu0 %v581
        %v978 = vpop.f32.mrf.mxu0
        %v979 = vadd.f32 0.0, %v978
        %980 = vmatmul.f32.gmra.mxu0 %v584
        %v981 = vpop.f32.mrf.mxu0
        %v982 = vadd.f32 0.0, %v981
        %983 = vdwg.mxu0
        %984 = vmatpush.msra.mxu0 %v489
        %985 = vmatpush.msra.mxu0 %v488
        %986 = vmatpush.msra.mxu0 %v487
        %987 = vmatpush.msra.mxu0 %v486
        %988 = vmatpush.msra.mxu0 %v485
        %989 = vmatpush.msra.mxu0 %v484
        %990 = vmatpush.msra.mxu0 %v483
        %991 = vmatpush.msra.mxu0 %v482
        %992 = vmatpush.msra.mxu0 %v481
        %993 = vmatpush.msra.mxu0 %v480
        %994 = vmatpush.msra.mxu0 %v479
        %995 = vmatpush.msra.mxu0 %v478
        %996 = vmatpush.msra.mxu0 %v477
        %997 = vmatpush.msra.mxu0 %v476
        %998 = vmatpush.msra.mxu0 %v475
        %999 = vmatpush.msra.mxu0 %v474
        %1000 = vmatmul.f32.gmra.mxu0 %v979
        %v1001 = vpop.f32.mrf.mxu0
        %v1002 = vadd.f32 0.0, %v1001
        %1003 = vmatmul.f32.gmra.mxu0 %v982
        %v1004 = vpop.f32.mrf.mxu0
        %v1005 = vadd.f32 0.0, %v1004
        %1006 = vdwg.mxu0
        %v1007 = vadd.f32 %v956, %v1002
        %v1008 = vadd.f32 %v959, %v1005
        %1009 = vmatpush.msra.mxu0 0.0
        %1010 = vmatpush.msra.mxu0 0.0
        %1011 = vmatpush.msra.mxu0 0.0
        %1012 = vmatpush.msra.mxu0 0.0
        %1013 = vmatpush.msra.mxu0 0.0
        %1014 = vmatpush.msra.mxu0 0.0
        %1015 = vmatpush.msra.mxu0 0.0
        %1016 = vmatpush.msra.mxu0 0.0
        %1017 = vmatpush.msra.mxu0 0.0
        %1018 = vmatpush.msra.mxu0 0.0
        %1019 = vmatpush.msra.mxu0 0.0
        %1020 = vmatpush.msra.mxu0 0.0
        %1021 = vmatpush.msra.mxu0 0.0
        %1022 = vmatpush.msra.mxu0 0.0
        %1023 = vmatpush.msra.mxu0 %v982
        %1024 = vmatpush.msra.mxu0 %v979
        %1025 = vmatmul.f32.gmra.mxu0 %v581
        %v1026 = vpop.f32.mrf.mxu0
        %v1027 = vadd.f32 0.0, %v1026
        %1028 = vmatmul.f32.gmra.mxu0 %v584
        %v1029 = vpop.f32.mrf.mxu0
        %v1030 = vadd.f32 0.0, %v1029
        %1031 = vdwg.mxu0
        %1032 = vmatpush.msra.mxu0 %v506
        %1033 = vmatpush.msra.mxu0 %v505
        %1034 = vmatpush.msra.mxu0 %v504
        %1035 = vmatpush.msra.mxu0 %v503
        %1036 = vmatpush.msra.mxu0 %v502
        %1037 = vmatpush.msra.mxu0 %v501
        %1038 = vmatpush.msra.mxu0 %v500
        %1039 = vmatpush.msra.mxu0 %v499
        %1040 = vmatpush.msra.mxu0 %v498
        %1041 = vmatpush.msra.mxu0 %v497
        %1042 = vmatpush.msra.mxu0 %v496
        %1043 = vmatpush.msra.mxu0 %v495
        %1044 = vmatpush.msra.mxu0 %v494
        %1045 = vmatpush.msra.mxu0 %v493
        %1046 = vmatpush.msra.mxu0 %v492
        %1047 = vmatpush.msra.mxu0 %v491
        %1048 = vmatmul.f32.gmra.mxu0 %v1027
        %v1049 = vpop.f32.mrf.mxu0
        %v1050 = vadd.f32 0.0, %v1049
        %1051 = vmatmul.f32.gmra.mxu0 %v1030
        %v1052 = vpop.f32.mrf.mxu0
        %v1053 = vadd.f32 0.0, %v1052
        %1054 = vdwg.mxu0
        %v1055 = vadd.f32 %v1007, %v1050
        %v1056 = vadd.f32 %v1008, %v1053
        %v1057 = vtanh.pop %v1055
        %v1058 = vtanh.pop %v1056
        %v1059 = vmul.f32 %v1057, 0.1
        %v1060 = vmul.f32 %v1058, 0.1
        %v1061 = vadd.f32 %v811, %v1059
        %v1062 = vadd.f32 %v812, %v1060
        %1063 = vmatpush.msra.mxu0 %v472
        %1064 = vmatpush.msra.mxu0 %v471
        %1065 = vmatpush.msra.mxu0 %v470
        %1066 = vmatpush.msra.mxu0 %v469
        %1067 = vmatpush.msra.mxu0 %v468
        %1068 = vmatpush.msra.mxu0 %v467
        %1069 = vmatpush.msra.mxu0 %v466
        %1070 = vmatpush.msra.mxu0 %v465
        %1071 = vmatpush.msra.mxu0 %v464
        %1072 = vmatpush.msra.mxu0 %v463
        %1073 = vmatpush.msra.mxu0 %v462
        %1074 = vmatpush.msra.mxu0 %v461
        %1075 = vmatpush.msra.mxu0 %v460
        %1076 = vmatpush.msra.mxu0 %v459
        %1077 = vmatpush.msra.mxu0 %v458
        %1078 = vmatpush.msra.mxu0 %v457
        %1079 = vmatmul.f32.gmra.mxu0 %v1061
        %v1080 = vpop.f32.mrf.mxu0
        %v1081 = vadd.f32 %v509, %v1080
        %1082 = vmatmul.f32.gmra.mxu0 %v1062
        %v1083 = vpop.f32.mrf.mxu0
        %v1084 = vadd.f32 %v509, %v1083
        %1085 = vdwg.mxu0
        %1086 = vmatpush.msra.mxu0 0.0
        %1087 = vmatpush.msra.mxu0 0.0
        %1088 = vmatpush.msra.mxu0 0.0
        %1089 = vmatpush.msra.mxu0 0.0
        %1090 = vmatpush.msra.mxu0 0.0
        %1091 = vmatpush.msra.mxu0 0.0
        %1092 = vmatpush.msra.mxu0 0.0
        %1093 = vmatpush.msra.mxu0 0.0
        %1094 = vmatpush.msra.mxu0 0.0
        %1095 = vmatpush.msra.mxu0 0.0
        %1096 = vmatpush.msra.mxu0 0.0
        %1097 = vmatpush.msra.mxu0 0.0
        %1098 = vmatpush.msra.mxu0 0.0
        %1099 = vmatpush.msra.mxu0 0.0
        %1100 = vmatpush.msra.mxu0 %v1062
        %1101 = vmatpush.msra.mxu0 %v1061
        %1102 = vmatmul.f32.gmra.mxu0 %v581
        %v1103 = vpop.f32.mrf.mxu0
        %v1104 = vadd.f32 0.0, %v1103
        %1105 = vmatmul.f32.gmra.mxu0 %v584
        %v1106 = vpop.f32.mrf.mxu0
        %v1107 = vadd.f32 0.0, %v1106
        %1108 = vdwg.mxu0
        %1109 = vmatpush.msra.mxu0 %v489
        %1110 = vmatpush.msra.mxu0 %v488
        %1111 = vmatpush.msra.mxu0 %v487
        %1112 = vmatpush.msra.mxu0 %v486
        %1113 = vmatpush.msra.mxu0 %v485
        %1114 = vmatpush.msra.mxu0 %v484
        %1115 = vmatpush.msra.mxu0 %v483
        %1116 = vmatpush.msra.mxu0 %v482
        %1117 = vmatpush.msra.mxu0 %v481
        %1118 = vmatpush.msra.mxu0 %v480
        %1119 = vmatpush.msra.mxu0 %v479
        %1120 = vmatpush.msra.mxu0 %v478
        %1121 = vmatpush.msra.mxu0 %v477
        %1122 = vmatpush.msra.mxu0 %v476
        %1123 = vmatpush.msra.mxu0 %v475
        %1124 = vmatpush.msra.mxu0 %v474
        %1125 = vmatmul.f32.gmra.mxu0 %v1104
        %v1126 = vpop.f32.mrf.mxu0
        %v1127 = vadd.f32 0.0, %v1126
        %1128 = vmatmul.f32.gmra.mxu0 %v1107
        %v1129 = vpop.f32.mrf.mxu0
        %v1130 = vadd.f32 0.0, %v1129
        %1131 = vdwg.mxu0
        %v1132 = vadd.f32 %v1081, %v1127
        %v1133 = vadd.f32 %v1084, %v1130
        %1134 = vmatpush.msra.mxu0 0.0
        %1135 = vmatpush.msra.mxu0 0.0
        %1136 = vmatpush.msra.mxu0 0.0
        %1137 = vmatpush.msra.mxu0 0.0
        %1138 = vmatpush.msra.mxu0 0.0
        %1139 = vmatpush.msra.mxu0 0.0
        %1140 = vmatpush.msra.mxu0 0.0
        %1141 = vmatpush.msra.mxu0 0.0
        %1142 = vmatpush.msra.mxu0 0.0
        %1143 = vmatpush.msra.mxu0 0.0
        %1144 = vmatpush.msra.mxu0 0.0
        %1145 = vmatpush.msra.mxu0 0.0
        %1146 = vmatpush.msra.mxu0 0.0
        %1147 = vmatpush.msra.mxu0 0.0
        %1148 = vmatpush.msra.mxu0 %v1107
        %1149 = vmatpush.msra.mxu0 %v1104
        %1150 = vmatmul.f32.gmra.mxu0 %v581
        %v1151 = vpop.f32.mrf.mxu0
        %v1152 = vadd.f32 0.0, %v1151
        %1153 = vmatmul.f32.gmra.mxu0 %v584
        %v1154 = vpop.f32.mrf.mxu0
        %v1155 = vadd.f32 0.0, %v1154
        %1156 = vdwg.mxu0
        %1157 = vmatpush.msra.mxu0 %v506
        %1158 = vmatpush.msra.mxu0 %v505
        %1159 = vmatpush.msra.mxu0 %v504
        %1160 = vmatpush.msra.mxu0 %v503
        %1161 = vmatpush.msra.mxu0 %v502
        %1162 = vmatpush.msra.mxu0 %v501
        %1163 = vmatpush.msra.mxu0 %v500
        %1164 = vmatpush.msra.mxu0 %v499
        %1165 = vmatpush.msra.mxu0 %v498
        %1166 = vmatpush.msra.mxu0 %v497
        %1167 = vmatpush.msra.mxu0 %v496
        %1168 = vmatpush.msra.mxu0 %v495
        %1169 = vmatpush.msra.mxu0 %v494
        %1170 = vmatpush.msra.mxu0 %v493
        %1171 = vmatpush.msra.mxu0 %v492
        %1172 = vmatpush.msra.mxu0 %v491
        %1173 = vmatmul.f32.gmra.mxu0 %v1152
        %v1174 = vpop.f32.mrf.mxu0
        %v1175 = vadd.f32 0.0, %v1174
        %1176 = vmatmul.f32.gmra.mxu0 %v1155
        %v1177 = vpop.f32.mrf.mxu0
        %v1178 = vadd.f32 0.0, %v1177
        %1179 = vdwg.mxu0
        %v1180 = vadd.f32 %v1132, %v1175
        %v1181 = vadd.f32 %v1133, %v1178
        %v1182 = vtanh.pop %v1180
        %v1183 = vtanh.pop %v1181
        %v1184 = vmul.f32 %v1182, 0.05
        %v1185 = vmul.f32 %v1183, 0.05
        %v1186 = vadd.f32 %v1061, %v1184
        %v1187 = vadd.f32 %v1062, %v1185
        %1188 = vst [vmem:[%s454] sm:$0xff] %v1186
        %1189 = vst [vmem:[%s454 + $0x8] sm:$0xff] %v1187
        %v1190 = vld [vmem:[#allocation10] sm:$0xff]
        %v1191 = vld [vmem:[#allocation10 + $0x8] sm:$0xff]
        %v1192 = vld [vmem:[#allocation10 + $0x10] sm:$0xff]
        %v1193 = vld [vmem:[#allocation10 + $0x18] sm:$0xff]
        %v1194 = vld [vmem:[#allocation10 + $0x20] sm:$0xff]
        %v1195 = vld [vmem:[#allocation10 + $0x28] sm:$0xff]
        %v1196 = vld [vmem:[#allocation10 + $0x30] sm:$0xff]
        %v1197 = vld [vmem:[#allocation10 + $0x38] sm:$0xff]
        %v1198 = vld [vmem:[#allocation10 + $0x40] sm:$0xff]
        %v1199 = vld [vmem:[#allocation10 + $0x48] sm:$0xff]
        %v1200 = vld [vmem:[#allocation10 + $0x50] sm:$0xff]
        %v1201 = vld [vmem:[#allocation10 + $0x58] sm:$0xff]
        %v1202 = vld [vmem:[#allocation10 + $0x60] sm:$0xff]
        %v1203 = vld [vmem:[#allocation10 + $0x68] sm:$0xff]
        %v1204 = vld [vmem:[#allocation10 + $0x70] sm:$0xff]
        %v1205 = vld [vmem:[#allocation10 + $0x78] sm:$0xff]
        %v1206 = vld [vmem:[%s7] sm:$0x1]
        %v1208 = vperm.slane %v1206, 0
        %1210 = vmatpush.msra.mxu0 %v1205
        %1211 = vmatpush.msra.mxu0 %v1204
        %1212 = vmatpush.msra.mxu0 %v1203
        %1213 = vmatpush.msra.mxu0 %v1202
        %1214 = vmatpush.msra.mxu0 %v1201
        %1215 = vmatpush.msra.mxu0 %v1200
        %1216 = vmatpush.msra.mxu0 %v1199
        %1217 = vmatpush.msra.mxu0 %v1198
        %1218 = vmatpush.msra.mxu0 %v1197
        %1219 = vmatpush.msra.mxu0 %v1196
        %1220 = vmatpush.msra.mxu0 %v1195
        %1221 = vmatpush.msra.mxu0 %v1194
        %1222 = vmatpush.msra.mxu0 %v1193
        %1223 = vmatpush.msra.mxu0 %v1192
        %1224 = vmatpush.msra.mxu0 %v1191
        %1225 = vmatpush.msra.mxu0 %v1190
        %1226 = vmatmul.f32.gmra.mxu0 %v1186
        %v1227 = vpop.f32.mrf.mxu0
        %v1228 = vadd.f32 %v1208, %v1227
        %1229 = vmatmul.f32.gmra.mxu0 %v1187
        %v1230 = vpop.f32.mrf.mxu0
        %v1231 = vadd.f32 %v1208, %v1230
        %1232 = vdwg.mxu0
        %1233 = vst [vmem:[%s447] sm:$0xff] %v1228
        %1234 = vst [vmem:[%s447 + $0x8] sm:$0xff] %v1231
        %s1235 = sand.u32 %s220, 1
        %s1236 = scalar_lea.sflag [#allocation4], %s1235
        %s1237 = sand.u32 %s220, 1
        %s1238 = smul.addr %s1237, 16
        %s1239 = scalar_lea.vmem [#allocation11], %s1238
        %s1240 = sand.u32 %s246, 1
        %s1241 = scalar_lea.sflag [#allocation13], %s1240
        %s1242 = sand.u32 %s246, 1
        %s1243 = smul.addr %s1242, 16
        %s1244 = scalar_lea.vmem [#allocation12], %s1243
        // Predicated region
        $region73: #{tpu_custom_call.1} parent=51 // pred_check
          %p1245 = pneg %p230
        $region74: #{tpu_custom_call.1} parent=51 // pred_check_branch
          %1247 = sbr.rel (%p1245) target = $region76
        $region75: #{tpu_custom_call.1} parent=51 // pred_region
          %1249 = vsyncadd %s1236, 0
          %s1250 = smul.addr %s34, 2
          %s1251 = smul.addr %s1250, 8
          %s1252 = scalar_lea.hbm %s8, %s1251
          %s1253 = sshll.u32 %s1239, 4
          %s1254 = int_to_ptr.vmem [resolvable:$true] %s1253
          %s1255 = sshll.u32 %s1252, 4
          %s1256 = int_to_ptr.hbm [resolvable:$true] %s1255
          %1261 = dma.vmem_to_hbm [thread:$0]  %s1254, 256, %s1256, %s1236, 128, 128, 8
        $region76: #{tpu_custom_call.1} parent=51 // pred_fallthru
          _
        // Predicated region
        $region77: #{tpu_custom_call.1} parent=51 // pred_check
          %p1262 = pneg %p256
        $region78: #{tpu_custom_call.1} parent=51 // pred_check_branch
          %1264 = sbr.rel (%p1262) target = $region80
        $region79: #{tpu_custom_call.1} parent=51 // pred_region
          %1266 = vsyncadd %s1241, 0
          %s1267 = smul.addr %s34, 2
          %s1268 = smul.addr %s1267, 8
          %s1269 = scalar_lea.hbm %s9, %s1268
          %s1270 = sshll.u32 %s1244, 4
          %s1271 = int_to_ptr.vmem [resolvable:$true] %s1270
          %s1272 = sshll.u32 %s1269, 4
          %s1273 = int_to_ptr.hbm [resolvable:$true] %s1272
          %1278 = dma.vmem_to_hbm [thread:$0]  %s1271, 256, %s1273, %s1241, 128, 128, 8
        $region80: #{tpu_custom_call.1} parent=51 // pred_fallthru
          _
      $region52: #{tpu_custom_call.1} parent=5 // pred_fallthru
        _
      %p1279 = scmp.le.s32.totalorder 2, %s29
      // Predicated region
      $region81: #{tpu_custom_call.1} parent=5 // pred_check
        %p1280 = pneg %p1279
      $region82: #{tpu_custom_call.1} parent=5 // pred_check_branch
        %1282 = sbr.rel (%p1280) target = $region84
      $region83: #{tpu_custom_call.1} parent=5 // pred_region
        %s1283 = ssub.s32 %s29, 2
        // Predicated region
        $region85: #{tpu_custom_call.1} parent=83 // pred_check
          %p1284 = pneg %p236
        $region86: #{tpu_custom_call.1} parent=83 // pred_check_branch
          %1286 = sbr.rel (%p1284) target = $region88
        $region87: #{tpu_custom_call.1} parent=83 // pred_region
          %s1287 = sand.u32 %s221, 1
          %s1288 = scalar_lea.sflag [#allocation4], %s1287
          %s1289 = sand.u32 %s221, 1
          %s1290 = smul.addr %s1289, 16
          %s1291 = scalar_lea.vmem [#allocation11], %s1290
          %1293 = dma.done %s1288, 256
        $region88: #{tpu_custom_call.1} parent=83 // pred_fallthru
          _
        // Predicated region
        $region89: #{tpu_custom_call.1} parent=83 // pred_check
          %p1294 = pneg %p262
        $region90: #{tpu_custom_call.1} parent=83 // pred_check_branch
          %1296 = sbr.rel (%p1294) target = $region92
        $region91: #{tpu_custom_call.1} parent=83 // pred_region
          %s1297 = sand.u32 %s247, 1
          %s1298 = scalar_lea.sflag [#allocation13], %s1297
          %s1299 = sand.u32 %s247, 1
          %s1300 = smul.addr %s1299, 16
          %s1301 = scalar_lea.vmem [#allocation12], %s1300
          %1303 = dma.done %s1298, 256
        $region92: #{tpu_custom_call.1} parent=83 // pred_fallthru
          _
      $region84: #{tpu_custom_call.1} parent=5 // pred_fallthru
        _
    $region6: #{tpu_custom_call.1} parent=1 // loop_footer
      %s33 = sadd.s32 1, %s29
    $region7: #{tpu_custom_call.1} parent=1 // loop_footer_branch
      %28 = sbr.rel target = $region3
    $region8: #{tpu_custom_call.1} parent=1 // loop_exit
      _
    %1304 = vsyncpa [#allocation3], 1
    %s1305 = scalar_lea.sflag [#allocation3], 1
    %1306 = vsyncpa %s1305, 1
    %1307 = vsyncpa [#allocation6], 1
    %s1308 = scalar_lea.sflag [#allocation6], 1
    %1309 = vsyncpa %s1308, 1
    %1310 = vsyncpa [#allocation9], 1
    %1311 = vsyncpa [#allocation4], 1
    %s1312 = scalar_lea.sflag [#allocation4], 1
    %1313 = vsyncpa %s1312, 1
    %1314 = vsyncpa [#allocation13], 1
    %s1315 = scalar_lea.sflag [#allocation13], 1
    %1316 = vsyncpa %s1315, 1

</llo_original>
